<compile_context>
chip_gen: v7x
topology: tpu7x:2x2x1
jax: 0.10.0
libtpu: 0.0.40
codegen_flags: <defaults>
</compile_context>

<pallas_src>
import jax
import jax.numpy as jnp
from jax import lax
from jax.experimental import pallas as pl
from jax.experimental.pallas import tpu as pltpu

MOMENTUM = 0.999
TEMPERATURE = 0.01
INV_TEMPERATURE = 1.0 / TEMPERATURE   # multiply, never divide, in-kernel
EPS_SQ = 1e-24                        # F.normalize eps=1e-12, squared


# --------------------------- shared epilogue -------------------------------- #

def _l2_normalize(f):
    """F.normalize(p=2, dim=1, eps=1e-12) via rsqrt (EUP slot, no divide)."""
    ss = jnp.sum(f * f, axis=-1, keepdims=True)
    return f * lax.rsqrt(jnp.maximum(ss, EPS_SQ))


def _epilogue(q_acc, k_acc, bq, bk, queue, new_bk_ref, loss_ref):
    """Bias momentum update, L2 normalize, logits vs [k ; queue], CE loss."""
    # Momentum update of the bias (tiny; fused into the same launch).
    bk_new = MOMENTUM * bk + (1.0 - MOMENTUM) * bq
    new_bk_ref[...] = bk_new

    q = _l2_normalize(q_acc + bq)        # (B, K)
    k = _l2_normalize(k_acc + bk_new)    # (B, K)

    # logits = q @ concat([k, queue]).T / T without materializing the concat
    # or a transpose: two dot_generals contracting the last dims plus a joint
    # log-sum-exp.  Kept f32 (T = 0.01 amplifies rounding).
    dn = (((1,), (1,)), ((), ()))
    lk = lax.dot_general(q, k, dn,
                         preferred_element_type=jnp.float32) * INV_TEMPERATURE
    lq = lax.dot_general(q, queue, dn,
                         preferred_element_type=jnp.float32) * INV_TEMPERATURE

    # Reference module: CrossEntropy over q @ cat([k, queue]).T with
    # targets = arange(B)  =>  off-diagonal in-batch terms belong in the
    # denominator, so the full lk block stays in the LSE.
    m = jnp.maximum(jnp.max(lk, axis=-1, keepdims=True),
                    jnp.max(lq, axis=-1, keepdims=True))
    sumexp = (jnp.sum(jnp.exp(lk - m), axis=-1, keepdims=True)
              + jnp.sum(jnp.exp(lq - m), axis=-1, keepdims=True))
    lse = jnp.log(sumexp) + m                              # (B, 1)

    # Positive logit = diag(lk): row-wise VPU dot, no iota / where / select.
    pos = jnp.sum(q * k, axis=-1, keepdims=True) * INV_TEMPERATURE

    loss_ref[0, 0] = jnp.mean(lse - pos)                   # scalar -> SMEM


# ------------------------------- kernels ------------------------------------ #

def _moco_kernel_whole(xq_ref, xk_ref, wq_ref, bq_ref, wk_ref, bk_ref,
                       queue_ref, loss_ref, new_wk_ref, new_bk_ref):
    """Single-step kernel: whole W resident in VMEM, no scratch / pl.when."""
    # Momentum update of W in VMEM (f32 VPU), consumed directly by the
    # k-encode matmul and aliased back over the old w_k buffer.
    wk_new = MOMENTUM * wk_ref[...] + (1.0 - MOMENTUM) * wq_ref[...]
    new_wk_ref[...] = wk_new

    q_acc = jnp.dot(xq_ref[...].astype(jnp.bfloat16),
                    wq_ref[...].astype(jnp.bfloat16),
                    preferred_element_type=jnp.float32)
    k_acc = jnp.dot(xk_ref[...].astype(jnp.bfloat16),
                    wk_new.astype(jnp.bfloat16),
                    preferred_element_type=jnp.float32)

    _epilogue(q_acc, k_acc, bq_ref[...], bk_ref[...], queue_ref[...],
              new_bk_ref, loss_ref)


def _moco_kernel_tiled(xq_ref, xk_ref, wq_ref, bq_ref, wk_ref, bk_ref,
                       queue_ref, loss_ref, new_wk_ref, new_bk_ref,
                       qacc_ref, kacc_ref):
    """D-tiled kernel for large D: f32 VMEM accumulators over the D grid."""
    d = pl.program_id(0)
    nd = pl.num_programs(0)

    @pl.when(d == 0)
    def _init():
        qacc_ref[...] = jnp.zeros_like(qacc_ref)
        kacc_ref[...] = jnp.zeros_like(kacc_ref)

    wk_new = MOMENTUM * wk_ref[...] + (1.0 - MOMENTUM) * wq_ref[...]
    new_wk_ref[...] = wk_new

    qacc_ref[...] += jnp.dot(xq_ref[...].astype(jnp.bfloat16),
                             wq_ref[...].astype(jnp.bfloat16),
                             preferred_element_type=jnp.float32)
    kacc_ref[...] += jnp.dot(xk_ref[...].astype(jnp.bfloat16),
                             wk_new.astype(jnp.bfloat16),
                             preferred_element_type=jnp.float32)

    @pl.when(d == nd - 1)
    def _finalize():
        _epilogue(qacc_ref[...], kacc_ref[...], bq_ref[...], bk_ref[...],
                  queue_ref[...], new_bk_ref, loss_ref)


# ------------------------------- wrapper ------------------------------------ #

def _vmem_bytes(B, block_d, K, Q, tiled):
    """Worst-case f32 VMEM footprint assuming every block is double-buffered."""
    per_block = (2 * B * block_d       # xq, xk tiles
                 + 3 * block_d * K     # w_q, w_k, new_w_k tiles
                 + 3 * K               # b_q, b_k, new_b_k
                 + Q * K)              # queue (block index never changes)
    scratch = 2 * B * K if tiled else 0
    return 4 * (2 * per_block + scratch)


def moco_forward(im_q, im_k, params_q, params_k, queue, *, block_d_override=None):
    """Functional equivalent of MoCo.forward as a single fused Pallas launch.

    Returns (loss, updated key-encoder params).  params_k['w'] / ['b'] are
    aliased to the outputs (in-place momentum update inside the kernel); for a
    true in-place update the caller must donate them at the jit boundary and
    must not reuse the old arrays afterwards.
    """
    B = im_q.shape[0]
    xq = im_q.reshape(B, -1)     # NCHW -> (B, C*H*W), row-major like .view
    xk = im_k.reshape(B, -1)
    D = xq.shape[1]
    K = params_q["w"].shape[1]
    Q = queue.shape[0]

    # VMEM budget: ~75% of physical (96 MiB on v5e/v6e, 48 MiB on v7x), with a
    # few MiB of headroom for compiler-internal scratch when tiling.
    try:
        phys_vmem = int(pltpu.get_tpu_info().vmem_capacity_bytes)
    except Exception:
        phys_vmem = 64 << 20     # conservative fallback (v7x per-core VMEM)
    vmem_limit = phys_vmem * 3 // 4
    block_budget = vmem_limit - (4 << 20)

    # ---- pick the D tiling -------------------------------------------------
    if block_d_override is not None:
        block_d = int(block_d_override)
        assert D % block_d == 0
    elif _vmem_bytes(B, D, K, Q, tiled=False) <= block_budget:
        block_d = D              # whole problem resident: 1 step, no scratch
    else:
        block_d = None
        bd = (D // 128) * 128    # largest lane-aligned candidate
        while bd >= 128:
            if D % bd == 0 and _vmem_bytes(B, bd, K, Q, tiled=True) <= block_budget:
                block_d = bd
                break
            bd -= 128
        if block_d is None:
            # TODO(synk): zero-pad D to a multiple of 128 (loss-neutral for
            # x @ w) instead of falling back to a whole-D resident block.
            block_d = D
    tiled = block_d != D
    grid = (D // block_d,)

    in_specs = [
        pl.BlockSpec((B, block_d), lambda d: (0, d)),     # xq
        pl.BlockSpec((B, block_d), lambda d: (0, d)),     # xk
        pl.BlockSpec((block_d, K), lambda d: (d, 0)),     # w_q
        pl.BlockSpec((1, K), lambda d: (0, 0)),           # b_q
        pl.BlockSpec((block_d, K), lambda d: (d, 0)),     # w_k (aliased out)
        pl.BlockSpec((1, K), lambda d: (0, 0)),           # b_k (aliased out)
        # Queue: block index never changes, DMA'd once.  NOTE: xq/xk/queue may
        # be supplied as bf16 by the caller to halve HBM traffic (kernel casts
        # for the MXU anyway); weights must stay f32 for the momentum update.
        pl.BlockSpec((Q, K), lambda d: (0, 0)),           # queue
    ]
    out_specs = (
        # Scalar loss through SMEM: avoids a masked vst into a padded (8,128)
        # VMEM tile plus a full-tile writeback DMA.
        pl.BlockSpec((1, 1), lambda d: (0, 0), memory_space=pltpu.SMEM),
        pl.BlockSpec((block_d, K), lambda d: (d, 0)),     # new w_k
        pl.BlockSpec((1, K), lambda d: (0, 0)),           # new b_k
    )

    kernel_fn = _moco_kernel_tiled if tiled else _moco_kernel_whole
    scratch_shapes = ([pltpu.VMEM((B, K), jnp.float32),
                       pltpu.VMEM((B, K), jnp.float32)] if tiled else [])

    loss, new_wk, new_bk = pl.pallas_call(
        kernel_fn,
        out_shape=(
            jax.ShapeDtypeStruct((1, 1), jnp.float32),    # loss
            jax.ShapeDtypeStruct((D, K), jnp.float32),    # new w_k
            jax.ShapeDtypeStruct((1, K), jnp.float32),    # new b_k
        ),
        grid=grid,
        in_specs=in_specs,
        out_specs=out_specs,
        scratch_shapes=scratch_shapes,
        # w_k / b_k are momentum-updated in place (donation hazard documented
        # in the docstring).
        input_output_aliases={4: 1, 5: 2},
        compiler_params=pltpu.CompilerParams(
            dimension_semantics=("arbitrary",),
            vmem_limit_bytes=int(vmem_limit)),
    )(xq, xk, params_q["w"], params_q["b"], params_k["w"], params_k["b"], queue)

    return loss[0, 0], {"w": new_wk, "b": new_bk}


# --------------------------- pure-JAX reference ----------------------------- #

def moco_reference(im_q, im_k, params_q, params_k, queue):
    """Direct jnp transcription of MoCo.forward (bf16 MXU inputs to match the
    kernel's encoder matmuls; everything else f32)."""
    B = im_q.shape[0]
    xq = im_q.reshape(B, -1)
    xk = im_k.reshape(B, -1)
    wk_new = MOMENTUM * params_k["w"] + (1.0 - MOMENTUM) * params_q["w"]
    bk_new = MOMENTUM * params_k["b"] + (1.0 - MOMENTUM) * params_q["b"]
    qf = jnp.dot(xq.astype(jnp.bfloat16), params_q["w"].astype(jnp.bfloat16),
                 preferred_element_type=jnp.float32) + params_q["b"]
    kf = jnp.dot(xk.astype(jnp.bfloat16), wk_new.astype(jnp.bfloat16),
                 preferred_element_type=jnp.float32) + bk_new
    q = qf / jnp.maximum(jnp.sqrt(jnp.sum(qf * qf, -1, keepdims=True)), 1e-12)
    k = kf / jnp.maximum(jnp.sqrt(jnp.sum(kf * kf, -1, keepdims=True)), 1e-12)
    all_k = jnp.concatenate([k, queue], axis=0)
    logits = jnp.dot(q, all_k.T, precision=lax.Precision.HIGHEST) / TEMPERATURE
    m = jnp.max(logits, axis=-1, keepdims=True)
    lse = jnp.log(jnp.sum(jnp.exp(logits - m), axis=-1, keepdims=True)) + m
    pos = logits[jnp.arange(B), jnp.arange(B)][:, None]
    return jnp.mean(lse - pos), wk_new, bk_new


# --------------------------------- main -------------------------------------- #

if __name__ == "__main__":
    # Small, tile-friendly shapes consistent with the module.
    B, C, H, W = 8, 4, 16, 16
    K_DIM = 128
    QUEUE_SIZE = 120            # logits row: 8 + 120 = 128 (lane-dense)
    D_IN = C * H * W            # 1024

    key = jax.random.PRNGKey(0)
    k1, k2, k3, k4 = jax.random.split(key, 4)

    im_q = jax.random.normal(k1, (B, C, H, W), jnp.float32)
    im_k = jax.random.normal(k2, (B, C, H, W), jnp.float32)

    # Abstract backbone realized as one Linear (C*H*W -> k_dim) with Identity
    # projector (projector_dims=None), so the encoder emits (B, k_dim).
    w = jax.random.normal(k3, (D_IN, K_DIM), jnp.float32) / jnp.sqrt(
        jnp.float32(D_IN))
    b = jnp.zeros((1, K_DIM), jnp.float32)
    params_q = {"w": w, "b": b}
    # k_encoder = copy.deepcopy(q_encoder): same values, distinct buffers.
    params_k = {"w": jnp.copy(w), "b": jnp.copy(b)}

    # register_buffer('queue', torch.randn(queue_size, k_dim))
    queue = jax.random.normal(k4, (QUEUE_SIZE, K_DIM), jnp.float32)
    # TODO(synk): queue_pointer / _enqueue_and_dequeue are not called inside
    # forward(), so no queue-update state is carried here (queue is read-only).

    loss, new_params_k = jax.jit(moco_forward)(
        im_q, im_k, params_q, params_k, queue)
    jax.block_until_ready(loss)

    ref_loss, ref_wk, ref_bk = moco_reference(
        im_q, im_k, params_q, params_k, queue)
    assert loss.shape == () and bool(jnp.isfinite(loss))
    assert new_params_k["w"].shape == (D_IN, K_DIM)
    assert bool(jnp.allclose(new_params_k["w"], ref_wk, rtol=1e-5, atol=1e-6))
    assert bool(jnp.allclose(new_params_k["b"], ref_bk, rtol=1e-5, atol=1e-6))
    assert bool(jnp.allclose(loss, ref_loss, rtol=2e-2, atol=1.0))

    # Also exercise the D-tiled (large-D) path once for coverage.
    loss_t, new_params_k_t = moco_forward(
        im_q, im_k, params_q, params_k, queue, block_d_override=256)
    jax.block_until_ready(loss_t)
    assert bool(jnp.allclose(loss_t, ref_loss, rtol=2e-2, atol=1.0))
    assert bool(jnp.allclose(new_params_k_t["w"], ref_wk, rtol=1e-5, atol=1e-6))

    print("KERNEL_OK")
</pallas_src>

<mosaic_0001>
module attributes {stable_mosaic.version = 11 : i64} {
  func.func @_moco_kernel_whole(%arg0: i32, %arg1: memref<8x1024xf32, #tpu.memory_space<vmem>>, %arg2: memref<8x1024xf32, #tpu.memory_space<vmem>>, %arg3: memref<1024x128xf32, #tpu.memory_space<vmem>>, %arg4: memref<1x128xf32, #tpu.memory_space<vmem>>, %arg5: memref<1024x128xf32, #tpu.memory_space<vmem>>, %arg6: memref<1x128xf32, #tpu.memory_space<vmem>>, %arg7: memref<120x128xf32, #tpu.memory_space<vmem>>, %arg8: memref<1x1xf32, #tpu.memory_space<smem>>, %arg9: memref<1024x128xf32, #tpu.memory_space<vmem>>, %arg10: memref<1x128xf32, #tpu.memory_space<vmem>>) attributes {dimension_semantics = [#tpu.dimension_semantics<arbitrary>], iteration_bounds = array<i64: 1>, scalar_prefetch = 0 : i64, scratch_operands = 0 : i64, tpu.core_type = #tpu.core_type<tc>, window_params = [{transform_indices = @transform_0, window_bounds = array<i64: 8, 1024>}, {transform_indices = @transform_1, window_bounds = array<i64: 8, 1024>}, {transform_indices = @transform_2, window_bounds = array<i64: 1024, 128>}, {pipeline_mode = #tpu.pipeline_mode<synchronous>, transform_indices = @transform_3, window_bounds = array<i64: 1, 128>}, {transform_indices = @transform_4, window_bounds = array<i64: 1024, 128>}, {pipeline_mode = #tpu.pipeline_mode<synchronous>, transform_indices = @transform_5, window_bounds = array<i64: 1, 128>}, {pipeline_mode = #tpu.pipeline_mode<synchronous>, transform_indices = @transform_6, window_bounds = array<i64: 120, 128>}, {transform_indices = @transform_7, window_bounds = array<i64: 1, 1>}, {transform_indices = @transform_8, window_bounds = array<i64: 1024, 128>}, {pipeline_mode = #tpu.pipeline_mode<synchronous>, transform_indices = @transform_9, window_bounds = array<i64: 1, 128>}]} {
    %c0 = arith.constant 0 : index
    %c0_0 = arith.constant 0 : index
    %0 = vector.load %arg5[%c0, %c0_0] : memref<1024x128xf32, #tpu.memory_space<vmem>>, vector<1024x128xf32>
    %cst = arith.constant 9.990000e-01 : f32
    %1 = vector.broadcast %cst : f32 to vector<1024x128xf32>
    %2 = arith.mulf %1, %0 : vector<1024x128xf32>
    %c0_1 = arith.constant 0 : index
    %c0_2 = arith.constant 0 : index
    %3 = vector.load %arg3[%c0_1, %c0_2] : memref<1024x128xf32, #tpu.memory_space<vmem>>, vector<1024x128xf32>
    %cst_3 = arith.constant 1.000000e-03 : f32
    %4 = vector.broadcast %cst_3 : f32 to vector<1024x128xf32>
    %5 = arith.mulf %4, %3 : vector<1024x128xf32>
    %6 = arith.addf %2, %5 : vector<1024x128xf32>
    %c0_4 = arith.constant 0 : index
    %c0_5 = arith.constant 0 : index
    %7 = vector.load %arg9[%c0_4, %c0_5] : memref<1024x128xf32, #tpu.memory_space<vmem>>, vector<1024x128xf32>
    tpu.vector_store %arg9[%c0_4, %c0_5], %6 {strides = array<i32>} : memref<1024x128xf32, #tpu.memory_space<vmem>>, vector<1024x128xf32>,
    %c0_6 = arith.constant 0 : index
    %c0_7 = arith.constant 0 : index
    %8 = vector.load %arg1[%c0_6, %c0_7] : memref<8x1024xf32, #tpu.memory_space<vmem>>, vector<8x1024xf32>
    %9 = arith.truncf %8 : vector<8x1024xf32> to vector<8x1024xbf16>
    %c0_8 = arith.constant 0 : index
    %c0_9 = arith.constant 0 : index
    %10 = vector.load %arg3[%c0_8, %c0_9] : memref<1024x128xf32, #tpu.memory_space<vmem>>, vector<1024x128xf32>
    %11 = arith.truncf %10 : vector<1024x128xf32> to vector<1024x128xbf16>
    %cst_10 = arith.constant dense<0.000000e+00> : vector<8x128xf32>
    %12 = tpu.matmul %9, %11, %cst_10 {dimension_numbers = #tpu.dot_dimension_numbers<[1], [0], [0], [1], [0, 0, 1, 1], [], []>} : vector<8x1024xbf16>, vector<1024x128xbf16>, vector<8x128xf32> -> vector<8x128xf32>
    %c0_11 = arith.constant 0 : index
    %c0_12 = arith.constant 0 : index
    %13 = vector.load %arg2[%c0_11, %c0_12] : memref<8x1024xf32, #tpu.memory_space<vmem>>, vector<8x1024xf32>
    %14 = arith.truncf %13 : vector<8x1024xf32> to vector<8x1024xbf16>
    %15 = arith.truncf %6 : vector<1024x128xf32> to vector<1024x128xbf16>
    %cst_13 = arith.constant dense<0.000000e+00> : vector<8x128xf32>
    %16 = tpu.matmul %14, %15, %cst_13 {dimension_numbers = #tpu.dot_dimension_numbers<[1], [0], [0], [1], [0, 0, 1, 1], [], []>} : vector<8x1024xbf16>, vector<1024x128xbf16>, vector<8x128xf32> -> vector<8x128xf32>
    %c0_14 = arith.constant 0 : index
    %c0_15 = arith.constant 0 : index
    %17 = vector.load %arg4[%c0_14, %c0_15] : memref<1x128xf32, #tpu.memory_space<vmem>>, vector<1x128xf32>
    %c0_16 = arith.constant 0 : index
    %c0_17 = arith.constant 0 : index
    %18 = vector.load %arg6[%c0_16, %c0_17] : memref<1x128xf32, #tpu.memory_space<vmem>>, vector<1x128xf32>
    %c0_18 = arith.constant 0 : index
    %c0_19 = arith.constant 0 : index
    %19 = vector.load %arg7[%c0_18, %c0_19] : memref<120x128xf32, #tpu.memory_space<vmem>>, vector<120x128xf32>
    %cst_20 = arith.constant 9.990000e-01 : f32
    %20 = vector.broadcast %cst_20 : f32 to vector<1x128xf32>
    %21 = arith.mulf %20, %18 : vector<1x128xf32>
    %cst_21 = arith.constant 1.000000e-03 : f32
    %22 = vector.broadcast %cst_21 : f32 to vector<1x128xf32>
    %23 = arith.mulf %22, %17 : vector<1x128xf32>
    %24 = arith.addf %21, %23 : vector<1x128xf32>
    %c0_22 = arith.constant 0 : index
    %c0_23 = arith.constant 0 : index
    %25 = vector.load %arg10[%c0_22, %c0_23] : memref<1x128xf32, #tpu.memory_space<vmem>>, vector<1x128xf32>
    tpu.vector_store %arg10[%c0_22, %c0_23], %24 {strides = array<i32>} : memref<1x128xf32, #tpu.memory_space<vmem>>, vector<1x128xf32>,
    %26 = vector.broadcast %17 : vector<1x128xf32> to vector<8x128xf32>
    %27 = arith.addf %12, %26 : vector<8x128xf32>
    %28 = arith.mulf %27, %27 : vector<8x128xf32>
    %cst_24 = arith.constant dense<0.000000e+00> : vector<8xf32>
    %29 = vector.multi_reduction <add>, %28, %cst_24 [1] : vector<8x128xf32> to vector<8xf32>
    %30 = vector.shape_cast %29 : vector<8xf32> to vector<8x1xf32>
    %cst_25 = arith.constant 1.000000e-24 : f32
    %31 = vector.broadcast %cst_25 : f32 to vector<8x1xf32>
    %32 = arith.maximumf %30, %31 : vector<8x1xf32>
    %33 = math.rsqrt %32 : vector<8x1xf32>
    %34 = vector.broadcast %33 : vector<8x1xf32> to vector<8x128xf32>
    %35 = arith.mulf %27, %34 : vector<8x128xf32>
    %36 = vector.broadcast %24 : vector<1x128xf32> to vector<8x128xf32>
    %37 = arith.addf %16, %36 : vector<8x128xf32>
    %38 = arith.mulf %37, %37 : vector<8x128xf32>
    %cst_26 = arith.constant dense<0.000000e+00> : vector<8xf32>
    %39 = vector.multi_reduction <add>, %38, %cst_26 [1] : vector<8x128xf32> to vector<8xf32>
    %40 = vector.shape_cast %39 : vector<8xf32> to vector<8x1xf32>
    %cst_27 = arith.constant 1.000000e-24 : f32
    %41 = vector.broadcast %cst_27 : f32 to vector<8x1xf32>
    %42 = arith.maximumf %40, %41 : vector<8x1xf32>
    %43 = math.rsqrt %42 : vector<8x1xf32>
    %44 = vector.broadcast %43 : vector<8x1xf32> to vector<8x128xf32>
    %45 = arith.mulf %37, %44 : vector<8x128xf32>
    %cst_28 = arith.constant dense<0.000000e+00> : vector<8x8xf32>
    %46 = tpu.matmul %35, %45, %cst_28 {dimension_numbers = #tpu.dot_dimension_numbers<[1], [1], [0], [0], [0, 0, 1, 0], [], []>} : vector<8x128xf32>, vector<8x128xf32>, vector<8x8xf32> -> vector<8x8xf32>
    %cst_29 = arith.constant 1.000000e+02 : f32
    %47 = vector.broadcast %cst_29 : f32 to vector<8x8xf32>
    %48 = arith.mulf %46, %47 : vector<8x8xf32>
    %cst_30 = arith.constant dense<0.000000e+00> : vector<8x120xf32>
    %49 = tpu.matmul %35, %19, %cst_30 {dimension_numbers = #tpu.dot_dimension_numbers<[1], [1], [0], [0], [0, 0, 1, 0], [], []>} : vector<8x128xf32>, vector<120x128xf32>, vector<8x120xf32> -> vector<8x120xf32>
    %cst_31 = arith.constant 1.000000e+02 : f32
    %50 = vector.broadcast %cst_31 : f32 to vector<8x120xf32>
    %51 = arith.mulf %49, %50 : vector<8x120xf32>
    %cst_32 = arith.constant dense<0xFF800000> : vector<8xf32>
    %52 = vector.multi_reduction <maximumf>, %48, %cst_32 [1] : vector<8x8xf32> to vector<8xf32>
    %53 = vector.shape_cast %52 : vector<8xf32> to vector<8x1xf32>
    %cst_33 = arith.constant dense<0xFF800000> : vector<8xf32>
    %54 = vector.multi_reduction <maximumf>, %51, %cst_33 [1] : vector<8x120xf32> to vector<8xf32>
    %55 = vector.shape_cast %54 : vector<8xf32> to vector<8x1xf32>
    %56 = arith.maximumf %53, %55 : vector<8x1xf32>
    %57 = vector.broadcast %56 : vector<8x1xf32> to vector<8x8xf32>
    %58 = arith.subf %48, %57 : vector<8x8xf32>
    %59 = math.exp %58 : vector<8x8xf32>
    %cst_34 = arith.constant dense<0.000000e+00> : vector<8xf32>
    %60 = vector.multi_reduction <add>, %59, %cst_34 [1] : vector<8x8xf32> to vector<8xf32>
    %61 = vector.shape_cast %60 : vector<8xf32> to vector<8x1xf32>
    %62 = vector.broadcast %56 : vector<8x1xf32> to vector<8x120xf32>
    %63 = arith.subf %51, %62 : vector<8x120xf32>
    %64 = math.exp %63 : vector<8x120xf32>
    %cst_35 = arith.constant dense<0.000000e+00> : vector<8xf32>
    %65 = vector.multi_reduction <add>, %64, %cst_35 [1] : vector<8x120xf32> to vector<8xf32>
    %66 = vector.shape_cast %65 : vector<8xf32> to vector<8x1xf32>
    %67 = arith.addf %61, %66 : vector<8x1xf32>
    %68 = math.log %67 : vector<8x1xf32>
    %69 = arith.addf %68, %56 : vector<8x1xf32>
    %70 = arith.mulf %35, %45 : vector<8x128xf32>
    %cst_36 = arith.constant dense<0.000000e+00> : vector<8xf32>
    %71 = vector.multi_reduction <add>, %70, %cst_36 [1] : vector<8x128xf32> to vector<8xf32>
    %72 = vector.shape_cast %71 : vector<8xf32> to vector<8x1xf32>
    %cst_37 = arith.constant 1.000000e+02 : f32
    %73 = vector.broadcast %cst_37 : f32 to vector<8x1xf32>
    %74 = arith.mulf %72, %73 : vector<8x1xf32>
    %75 = arith.subf %69, %74 : vector<8x1xf32>
    %76 = vector.shape_cast %75 : vector<8x1xf32> to vector<1x8x1xf32>
    %cst_38 = arith.constant dense<0.000000e+00> : vector<1xf32>
    %77 = vector.multi_reduction <add>, %76, %cst_38 [1, 2] : vector<1x8x1xf32> to vector<1xf32>
    %78 = vector.shape_cast %77 : vector<1xf32> to vector<1x1x1xf32>
    %79 = vector.extract %78[0, 0, 0] : f32 from vector<1x1x1xf32>
    %cst_39 = arith.constant 8.000000e+00 : f32
    %80 = arith.divf %79, %cst_39 : f32
    %c0_40 = arith.constant 0 : index
    %c0_41 = arith.constant 0 : index
    %81 = memref.load %arg8[%c0_40, %c0_41] : memref<1x1xf32, #tpu.memory_space<smem>>
    memref.store %80, %arg8[%c0_40, %c0_41] : memref<1x1xf32, #tpu.memory_space<smem>>
    return
  }
  func.func @transform_0(%arg0: i32) -> (i32, i32) {
    %c0_i32 = arith.constant 0 : i32
    %c0_i32_0 = arith.constant 0 : i32
    return %c0_i32, %arg0 : i32, i32
  }
  func.func @transform_1(%arg0: i32) -> (i32, i32) {
    %c0_i32 = arith.constant 0 : i32
    %c0_i32_0 = arith.constant 0 : i32
    return %c0_i32, %arg0 : i32, i32
  }
  func.func @transform_2(%arg0: i32) -> (i32, i32) {
    %c0_i32 = arith.constant 0 : i32
    %c0_i32_0 = arith.constant 0 : i32
    return %arg0, %c0_i32 : i32, i32
  }
  func.func @transform_3(%arg0: i32) -> (i32, i32) {
    %c0_i32 = arith.constant 0 : i32
    %c0_i32_0 = arith.constant 0 : i32
    %c0_i32_1 = arith.constant 0 : i32
    return %c0_i32, %c0_i32_0 : i32, i32
  }
  func.func @transform_4(%arg0: i32) -> (i32, i32) {
    %c0_i32 = arith.constant 0 : i32
    %c0_i32_0 = arith.constant 0 : i32
    return %arg0, %c0_i32 : i32, i32
  }
  func.func @transform_5(%arg0: i32) -> (i32, i32) {
    %c0_i32 = arith.constant 0 : i32
    %c0_i32_0 = arith.constant 0 : i32
    %c0_i32_1 = arith.constant 0 : i32
    return %c0_i32, %c0_i32_0 : i32, i32
  }
  func.func @transform_6(%arg0: i32) -> (i32, i32) {
    %c0_i32 = arith.constant 0 : i32
    %c0_i32_0 = arith.constant 0 : i32
    %c0_i32_1 = arith.constant 0 : i32
    return %c0_i32, %c0_i32_0 : i32, i32
  }
  func.func @transform_7(%arg0: i32) -> (i32, i32) {
    %c0_i32 = arith.constant 0 : i32
    %c0_i32_0 = arith.constant 0 : i32
    %c0_i32_1 = arith.constant 0 : i32
    return %c0_i32, %c0_i32_0 : i32, i32
  }
  func.func @transform_8(%arg0: i32) -> (i32, i32) {
    %c0_i32 = arith.constant 0 : i32
    %c0_i32_0 = arith.constant 0 : i32
    return %arg0, %c0_i32 : i32, i32
  }
  func.func @transform_9(%arg0: i32) -> (i32, i32) {
    %c0_i32 = arith.constant 0 : i32
    %c0_i32_0 = arith.constant 0 : i32
    %c0_i32_1 = arith.constant 0 : i32
    return %c0_i32, %c0_i32_0 : i32, i32
  }
}

</mosaic_0001>

<llo_original>
// kernel: moco_forward.1
$region0: #{moco_forward.1}
  #allocation0 [shape = 'u32[]', space=smem, size = 0x4, offset = 0x4, fixed_abs, tag = 'smem constant byte address 0x4 - core index']
  #allocation1 [shape = 'u32[144,128]{1,0:T(1,128)}', space=vmem, size = 0x12000, scoped, tag = 'internal scratch']
  %s0 = inlined_call_operand.vmem [shape: f32[8,1024], index: 0, kind: input, shape index: {}]
  %s1 = inlined_call_operand.vmem [shape: f32[8,1024], index: 1, kind: input, shape index: {}]
  %s2 = inlined_call_operand.vmem [shape: f32[1024,128], index: 2, kind: input, shape index: {}]
  %s3 = inlined_call_operand.vmem [shape: f32[1,128], index: 3, kind: input, shape index: {}]
  %s4 = inlined_call_operand.vmem [shape: f32[1024,128], index: 4, kind: input, shape index: {}, may-alias: {4,8}]
  %s5 = inlined_call_operand.vmem [shape: f32[1,128], index: 5, kind: input, shape index: {}, may-alias: {5,9}]
  %s6 = inlined_call_operand.vmem [shape: f32[120,128], index: 6, kind: input, shape index: {}]
  %s7 = inlined_call_operand.hbm [shape: f32[1,1], index: 7, kind: output, shape index: {0}]
  %s8 = inlined_call_operand.vmem [shape: f32[1024,128], index: 8, kind: output, shape index: {1}, may-alias: {4,8}]
  %s9 = inlined_call_operand.vmem [shape: f32[1,128], index: 9, kind: output, shape index: {2}, may-alias: {5,9}]
  %10 = xla_tuple %s7, %s8, %s9
  %s11 = sld [smem:[#allocation0]]
  $region54: #{moco_forward.1} parent=0
    _
  %s13 = ssub.s32 1, %s11
  %s14 = scalar_select 0, %s13, %s11
  $region1: #{moco_forward.1} parent=0
    #allocation2 [shape = 'u8[512]{0}', space=smem, size = 0x200, scoped, tag = 'output window, operand 0, single buffered']
    #allocation3 [shape = 's32[1]{0}', space=sflag, size = 0x4, scoped, tag = 'scoped memory for moco_forward.1']
    %15 = vsyncpa [#allocation3], 0
    // Predicated region
    $region2: #{moco_forward.1} parent=1 // pred_check
      _
    $region3: #{moco_forward.1} parent=1 // pred_check_branch
      %17 = sbr.rel (0) target = $region5
    $region4: #{moco_forward.1} parent=1 // pred_region
      _
    $region5: #{moco_forward.1} parent=1 // pred_fallthru
      _
    // Predicated region
    $region6: #{moco_forward.1} parent=1 // pred_check
      _
    $region7: #{moco_forward.1} parent=1 // pred_check_branch
      %19 = sbr.rel (0) target = $region9
    $region8: #{moco_forward.1} parent=1 // pred_region
      _
    $region9: #{moco_forward.1} parent=1 // pred_fallthru
      _
    // Predicated region
    $region10: #{moco_forward.1} parent=1 // pred_check
      _
    $region11: #{moco_forward.1} parent=1 // pred_check_branch
      %21 = sbr.rel (0) target = $region13
    $region12: #{moco_forward.1} parent=1 // pred_region
      _
    $region13: #{moco_forward.1} parent=1 // pred_fallthru
      _
    // Predicated region
    $region14: #{moco_forward.1} parent=1 // pred_check
      _
    $region15: #{moco_forward.1} parent=1 // pred_check_branch
      %23 = sbr.rel (0) target = $region17
    $region16: #{moco_forward.1} parent=1 // pred_region
      _
    $region17: #{moco_forward.1} parent=1 // pred_fallthru
      _
    // Predicated region
    $region18: #{moco_forward.1} parent=1 // pred_check
      _
    $region19: #{moco_forward.1} parent=1 // pred_check_branch
      %25 = sbr.rel (0) target = $region21
    $region20: #{moco_forward.1} parent=1 // pred_region
      _
    $region21: #{moco_forward.1} parent=1 // pred_fallthru
      _
    // Predicated region
    $region22: #{moco_forward.1} parent=1 // pred_check
      _
    $region23: #{moco_forward.1} parent=1 // pred_check_branch
      %27 = sbr.rel (0) target = $region25
    $region24: #{moco_forward.1} parent=1 // pred_region
      _
    $region25: #{moco_forward.1} parent=1 // pred_fallthru
      _
    // Predicated region
    $region26: #{moco_forward.1} parent=1 // pred_check
      _
    $region27: #{moco_forward.1} parent=1 // pred_check_branch
      %29 = sbr.rel (0) target = $region29
    $region28: #{moco_forward.1} parent=1 // pred_region
      _
    $region29: #{moco_forward.1} parent=1 // pred_fallthru
      _
    %v31 = vld [vmem:[%s4] sm:$0xff]
    %v32 = vld [vmem:[%s4 + $0x8] sm:$0xff]
    %v33 = vld [vmem:[%s4 + $0x10] sm:$0xff]
    %v34 = vld [vmem:[%s4 + $0x18] sm:$0xff]
    %v35 = vld [vmem:[%s4 + $0x20] sm:$0xff]
    %v36 = vld [vmem:[%s4 + $0x28] sm:$0xff]
    %v37 = vld [vmem:[%s4 + $0x30] sm:$0xff]
    %v38 = vld [vmem:[%s4 + $0x38] sm:$0xff]
    %v39 = vld [vmem:[%s4 + $0x40] sm:$0xff]
    %v40 = vld [vmem:[%s4 + $0x48] sm:$0xff]
    %v41 = vld [vmem:[%s4 + $0x50] sm:$0xff]
    %v42 = vld [vmem:[%s4 + $0x58] sm:$0xff]
    %v43 = vld [vmem:[%s4 + $0x60] sm:$0xff]
    %v44 = vld [vmem:[%s4 + $0x68] sm:$0xff]
    %v45 = vld [vmem:[%s4 + $0x70] sm:$0xff]
    %v46 = vld [vmem:[%s4 + $0x78] sm:$0xff]
    %v47 = vld [vmem:[%s4 + $0x80] sm:$0xff]
    %v48 = vld [vmem:[%s4 + $0x88] sm:$0xff]
    %v49 = vld [vmem:[%s4 + $0x90] sm:$0xff]
    %v50 = vld [vmem:[%s4 + $0x98] sm:$0xff]
    %v51 = vld [vmem:[%s4 + $0xa0] sm:$0xff]
    %v52 = vld [vmem:[%s4 + $0xa8] sm:$0xff]
    %v53 = vld [vmem:[%s4 + $0xb0] sm:$0xff]
    %v54 = vld [vmem:[%s4 + $0xb8] sm:$0xff]
    %v55 = vld [vmem:[%s4 + $0xc0] sm:$0xff]
    %v56 = vld [vmem:[%s4 + $0xc8] sm:$0xff]
    %v57 = vld [vmem:[%s4 + $0xd0] sm:$0xff]
    %v58 = vld [vmem:[%s4 + $0xd8] sm:$0xff]
    %v59 = vld [vmem:[%s4 + $0xe0] sm:$0xff]
    %v60 = vld [vmem:[%s4 + $0xe8] sm:$0xff]
    %v61 = vld [vmem:[%s4 + $0xf0] sm:$0xff]
    %v62 = vld [vmem:[%s4 + $0xf8] sm:$0xff]
    %v63 = vld [vmem:[%s4 + $0x100] sm:$0xff]
    %v64 = vld [vmem:[%s4 + $0x108] sm:$0xff]
    %v65 = vld [vmem:[%s4 + $0x110] sm:$0xff]
    %v66 = vld [vmem:[%s4 + $0x118] sm:$0xff]
    %v67 = vld [vmem:[%s4 + $0x120] sm:$0xff]
    %v68 = vld [vmem:[%s4 + $0x128] sm:$0xff]
    %v69 = vld [vmem:[%s4 + $0x130] sm:$0xff]
    %v70 = vld [vmem:[%s4 + $0x138] sm:$0xff]
    %v71 = vld [vmem:[%s4 + $0x140] sm:$0xff]
    %v72 = vld [vmem:[%s4 + $0x148] sm:$0xff]
    %v73 = vld [vmem:[%s4 + $0x150] sm:$0xff]
    %v74 = vld [vmem:[%s4 + $0x158] sm:$0xff]
    %v75 = vld [vmem:[%s4 + $0x160] sm:$0xff]
    %v76 = vld [vmem:[%s4 + $0x168] sm:$0xff]
    %v77 = vld [vmem:[%s4 + $0x170] sm:$0xff]
    %v78 = vld [vmem:[%s4 + $0x178] sm:$0xff]
    %v79 = vld [vmem:[%s4 + $0x180] sm:$0xff]
    %v80 = vld [vmem:[%s4 + $0x188] sm:$0xff]
    %v81 = vld [vmem:[%s4 + $0x190] sm:$0xff]
    %v82 = vld [vmem:[%s4 + $0x198] sm:$0xff]
    %v83 = vld [vmem:[%s4 + $0x1a0] sm:$0xff]
    %v84 = vld [vmem:[%s4 + $0x1a8] sm:$0xff]
    %v85 = vld [vmem:[%s4 + $0x1b0] sm:$0xff]
    %v86 = vld [vmem:[%s4 + $0x1b8] sm:$0xff]
    %v87 = vld [vmem:[%s4 + $0x1c0] sm:$0xff]
    %v88 = vld [vmem:[%s4 + $0x1c8] sm:$0xff]
    %v89 = vld [vmem:[%s4 + $0x1d0] sm:$0xff]
    %v90 = vld [vmem:[%s4 + $0x1d8] sm:$0xff]
    %v91 = vld [vmem:[%s4 + $0x1e0] sm:$0xff]
    %v92 = vld [vmem:[%s4 + $0x1e8] sm:$0xff]
    %v93 = vld [vmem:[%s4 + $0x1f0] sm:$0xff]
    %v94 = vld [vmem:[%s4 + $0x1f8] sm:$0xff]
    %v95 = vld [vmem:[%s4 + $0x200] sm:$0xff]
    %v96 = vld [vmem:[%s4 + $0x208] sm:$0xff]
    %v97 = vld [vmem:[%s4 + $0x210] sm:$0xff]
    %v98 = vld [vmem:[%s4 + $0x218] sm:$0xff]
    %v99 = vld [vmem:[%s4 + $0x220] sm:$0xff]
    %v100 = vld [vmem:[%s4 + $0x228] sm:$0xff]
    %v101 = vld [vmem:[%s4 + $0x230] sm:$0xff]
    %v102 = vld [vmem:[%s4 + $0x238] sm:$0xff]
    %v103 = vld [vmem:[%s4 + $0x240] sm:$0xff]
    %v104 = vld [vmem:[%s4 + $0x248] sm:$0xff]
    %v105 = vld [vmem:[%s4 + $0x250] sm:$0xff]
    %v106 = vld [vmem:[%s4 + $0x258] sm:$0xff]
    %v107 = vld [vmem:[%s4 + $0x260] sm:$0xff]
    %v108 = vld [vmem:[%s4 + $0x268] sm:$0xff]
    %v109 = vld [vmem:[%s4 + $0x270] sm:$0xff]
    %v110 = vld [vmem:[%s4 + $0x278] sm:$0xff]
    %v111 = vld [vmem:[%s4 + $0x280] sm:$0xff]
    %v112 = vld [vmem:[%s4 + $0x288] sm:$0xff]
    %v113 = vld [vmem:[%s4 + $0x290] sm:$0xff]
    %v114 = vld [vmem:[%s4 + $0x298] sm:$0xff]
    %v115 = vld [vmem:[%s4 + $0x2a0] sm:$0xff]
    %v116 = vld [vmem:[%s4 + $0x2a8] sm:$0xff]
    %v117 = vld [vmem:[%s4 + $0x2b0] sm:$0xff]
    %v118 = vld [vmem:[%s4 + $0x2b8] sm:$0xff]
    %v119 = vld [vmem:[%s4 + $0x2c0] sm:$0xff]
    %v120 = vld [vmem:[%s4 + $0x2c8] sm:$0xff]
    %v121 = vld [vmem:[%s4 + $0x2d0] sm:$0xff]
    %v122 = vld [vmem:[%s4 + $0x2d8] sm:$0xff]
    %v123 = vld [vmem:[%s4 + $0x2e0] sm:$0xff]
    %v124 = vld [vmem:[%s4 + $0x2e8] sm:$0xff]
    %v125 = vld [vmem:[%s4 + $0x2f0] sm:$0xff]
    %v126 = vld [vmem:[%s4 + $0x2f8] sm:$0xff]
    %v127 = vld [vmem:[%s4 + $0x300] sm:$0xff]
    %v128 = vld [vmem:[%s4 + $0x308] sm:$0xff]
    %v129 = vld [vmem:[%s4 + $0x310] sm:$0xff]
    %v130 = vld [vmem:[%s4 + $0x318] sm:$0xff]
    %v131 = vld [vmem:[%s4 + $0x320] sm:$0xff]
    %v132 = vld [vmem:[%s4 + $0x328] sm:$0xff]
    %v133 = vld [vmem:[%s4 + $0x330] sm:$0xff]
    %v134 = vld [vmem:[%s4 + $0x338] sm:$0xff]
    %v135 = vld [vmem:[%s4 + $0x340] sm:$0xff]
    %v136 = vld [vmem:[%s4 + $0x348] sm:$0xff]
    %v137 = vld [vmem:[%s4 + $0x350] sm:$0xff]
    %v138 = vld [vmem:[%s4 + $0x358] sm:$0xff]
    %v139 = vld [vmem:[%s4 + $0x360] sm:$0xff]
    %v140 = vld [vmem:[%s4 + $0x368] sm:$0xff]
    %v141 = vld [vmem:[%s4 + $0x370] sm:$0xff]
    %v142 = vld [vmem:[%s4 + $0x378] sm:$0xff]
    %v143 = vld [vmem:[%s4 + $0x380] sm:$0xff]
    %v144 = vld [vmem:[%s4 + $0x388] sm:$0xff]
    %v145 = vld [vmem:[%s4 + $0x390] sm:$0xff]
    %v146 = vld [vmem:[%s4 + $0x398] sm:$0xff]
    %v147 = vld [vmem:[%s4 + $0x3a0] sm:$0xff]
    %v148 = vld [vmem:[%s4 + $0x3a8] sm:$0xff]
    %v149 = vld [vmem:[%s4 + $0x3b0] sm:$0xff]
    %v150 = vld [vmem:[%s4 + $0x3b8] sm:$0xff]
    %v151 = vld [vmem:[%s4 + $0x3c0] sm:$0xff]
    %v152 = vld [vmem:[%s4 + $0x3c8] sm:$0xff]
    %v153 = vld [vmem:[%s4 + $0x3d0] sm:$0xff]
    %v154 = vld [vmem:[%s4 + $0x3d8] sm:$0xff]
    %v155 = vld [vmem:[%s4 + $0x3e0] sm:$0xff]
    %v156 = vld [vmem:[%s4 + $0x3e8] sm:$0xff]
    %v157 = vld [vmem:[%s4 + $0x3f0] sm:$0xff]
    %v158 = vld [vmem:[%s4 + $0x3f8] sm:$0xff]
    %v159 = vmul.f32 %v31, 0.999
    %v160 = vmul.f32 %v32, 0.999
    %v161 = vmul.f32 %v33, 0.999
    %v162 = vmul.f32 %v34, 0.999
    %v163 = vmul.f32 %v35, 0.999
    %v164 = vmul.f32 %v36, 0.999
    %v165 = vmul.f32 %v37, 0.999
    %v166 = vmul.f32 %v38, 0.999
    %v167 = vmul.f32 %v39, 0.999
    %v168 = vmul.f32 %v40, 0.999
    %v169 = vmul.f32 %v41, 0.999
    %v170 = vmul.f32 %v42, 0.999
    %v171 = vmul.f32 %v43, 0.999
    %v172 = vmul.f32 %v44, 0.999
    %v173 = vmul.f32 %v45, 0.999
    %v174 = vmul.f32 %v46, 0.999
    %v175 = vmul.f32 %v47, 0.999
    %v176 = vmul.f32 %v48, 0.999
    %v177 = vmul.f32 %v49, 0.999
    %v178 = vmul.f32 %v50, 0.999
    %v179 = vmul.f32 %v51, 0.999
    %v180 = vmul.f32 %v52, 0.999
    %v181 = vmul.f32 %v53, 0.999
    %v182 = vmul.f32 %v54, 0.999
    %v183 = vmul.f32 %v55, 0.999
    %v184 = vmul.f32 %v56, 0.999
    %v185 = vmul.f32 %v57, 0.999
    %v186 = vmul.f32 %v58, 0.999
    %v187 = vmul.f32 %v59, 0.999
    %v188 = vmul.f32 %v60, 0.999
    %v189 = vmul.f32 %v61, 0.999
    %v190 = vmul.f32 %v62, 0.999
    %v191 = vmul.f32 %v63, 0.999
    %v192 = vmul.f32 %v64, 0.999
    %v193 = vmul.f32 %v65, 0.999
    %v194 = vmul.f32 %v66, 0.999
    %v195 = vmul.f32 %v67, 0.999
    %v196 = vmul.f32 %v68, 0.999
    %v197 = vmul.f32 %v69, 0.999
    %v198 = vmul.f32 %v70, 0.999
    %v199 = vmul.f32 %v71, 0.999
    %v200 = vmul.f32 %v72, 0.999
    %v201 = vmul.f32 %v73, 0.999
    %v202 = vmul.f32 %v74, 0.999
    %v203 = vmul.f32 %v75, 0.999
    %v204 = vmul.f32 %v76, 0.999
    %v205 = vmul.f32 %v77, 0.999
    %v206 = vmul.f32 %v78, 0.999
    %v207 = vmul.f32 %v79, 0.999
    %v208 = vmul.f32 %v80, 0.999
    %v209 = vmul.f32 %v81, 0.999
    %v210 = vmul.f32 %v82, 0.999
    %v211 = vmul.f32 %v83, 0.999
    %v212 = vmul.f32 %v84, 0.999
    %v213 = vmul.f32 %v85, 0.999
    %v214 = vmul.f32 %v86, 0.999
    %v215 = vmul.f32 %v87, 0.999
    %v216 = vmul.f32 %v88, 0.999
    %v217 = vmul.f32 %v89, 0.999
    %v218 = vmul.f32 %v90, 0.999
    %v219 = vmul.f32 %v91, 0.999
    %v220 = vmul.f32 %v92, 0.999
    %v221 = vmul.f32 %v93, 0.999
    %v222 = vmul.f32 %v94, 0.999
    %v223 = vmul.f32 %v95, 0.999
    %v224 = vmul.f32 %v96, 0.999
    %v225 = vmul.f32 %v97, 0.999
    %v226 = vmul.f32 %v98, 0.999
    %v227 = vmul.f32 %v99, 0.999
    %v228 = vmul.f32 %v100, 0.999
    %v229 = vmul.f32 %v101, 0.999
    %v230 = vmul.f32 %v102, 0.999
    %v231 = vmul.f32 %v103, 0.999
    %v232 = vmul.f32 %v104, 0.999
    %v233 = vmul.f32 %v105, 0.999
    %v234 = vmul.f32 %v106, 0.999
    %v235 = vmul.f32 %v107, 0.999
    %v236 = vmul.f32 %v108, 0.999
    %v237 = vmul.f32 %v109, 0.999
    %v238 = vmul.f32 %v110, 0.999
    %v239 = vmul.f32 %v111, 0.999
    %v240 = vmul.f32 %v112, 0.999
    %v241 = vmul.f32 %v113, 0.999
    %v242 = vmul.f32 %v114, 0.999
    %v243 = vmul.f32 %v115, 0.999
    %v244 = vmul.f32 %v116, 0.999
    %v245 = vmul.f32 %v117, 0.999
    %v246 = vmul.f32 %v118, 0.999
    %v247 = vmul.f32 %v119, 0.999
    %v248 = vmul.f32 %v120, 0.999
    %v249 = vmul.f32 %v121, 0.999
    %v250 = vmul.f32 %v122, 0.999
    %v251 = vmul.f32 %v123, 0.999
    %v252 = vmul.f32 %v124, 0.999
    %v253 = vmul.f32 %v125, 0.999
    %v254 = vmul.f32 %v126, 0.999
    %v255 = vmul.f32 %v127, 0.999
    %v256 = vmul.f32 %v128, 0.999
    %v257 = vmul.f32 %v129, 0.999
    %v258 = vmul.f32 %v130, 0.999
    %v259 = vmul.f32 %v131, 0.999
    %v260 = vmul.f32 %v132, 0.999
    %v261 = vmul.f32 %v133, 0.999
    %v262 = vmul.f32 %v134, 0.999
    %v263 = vmul.f32 %v135, 0.999
    %v264 = vmul.f32 %v136, 0.999
    %v265 = vmul.f32 %v137, 0.999
    %v266 = vmul.f32 %v138, 0.999
    %v267 = vmul.f32 %v139, 0.999
    %v268 = vmul.f32 %v140, 0.999
    %v269 = vmul.f32 %v141, 0.999
    %v270 = vmul.f32 %v142, 0.999
    %v271 = vmul.f32 %v143, 0.999
    %v272 = vmul.f32 %v144, 0.999
    %v273 = vmul.f32 %v145, 0.999
    %v274 = vmul.f32 %v146, 0.999
    %v275 = vmul.f32 %v147, 0.999
    %v276 = vmul.f32 %v148, 0.999
    %v277 = vmul.f32 %v149, 0.999
    %v278 = vmul.f32 %v150, 0.999
    %v279 = vmul.f32 %v151, 0.999
    %v280 = vmul.f32 %v152, 0.999
    %v281 = vmul.f32 %v153, 0.999
    %v282 = vmul.f32 %v154, 0.999
    %v283 = vmul.f32 %v155, 0.999
    %v284 = vmul.f32 %v156, 0.999
    %v285 = vmul.f32 %v157, 0.999
    %v286 = vmul.f32 %v158, 0.999
    %v287 = vld [vmem:[%s2] sm:$0xff]
    %v288 = vld [vmem:[%s2 + $0x8] sm:$0xff]
    %v289 = vld [vmem:[%s2 + $0x10] sm:$0xff]
    %v290 = vld [vmem:[%s2 + $0x18] sm:$0xff]
    %v291 = vld [vmem:[%s2 + $0x20] sm:$0xff]
    %v292 = vld [vmem:[%s2 + $0x28] sm:$0xff]
    %v293 = vld [vmem:[%s2 + $0x30] sm:$0xff]
    %v294 = vld [vmem:[%s2 + $0x38] sm:$0xff]
    %v295 = vld [vmem:[%s2 + $0x40] sm:$0xff]
    %v296 = vld [vmem:[%s2 + $0x48] sm:$0xff]
    %v297 = vld [vmem:[%s2 + $0x50] sm:$0xff]
    %v298 = vld [vmem:[%s2 + $0x58] sm:$0xff]
    %v299 = vld [vmem:[%s2 + $0x60] sm:$0xff]
    %v300 = vld [vmem:[%s2 + $0x68] sm:$0xff]
    %v301 = vld [vmem:[%s2 + $0x70] sm:$0xff]
    %v302 = vld [vmem:[%s2 + $0x78] sm:$0xff]
    %v303 = vld [vmem:[%s2 + $0x80] sm:$0xff]
    %v304 = vld [vmem:[%s2 + $0x88] sm:$0xff]
    %v305 = vld [vmem:[%s2 + $0x90] sm:$0xff]
    %v306 = vld [vmem:[%s2 + $0x98] sm:$0xff]
    %v307 = vld [vmem:[%s2 + $0xa0] sm:$0xff]
    %v308 = vld [vmem:[%s2 + $0xa8] sm:$0xff]
    %v309 = vld [vmem:[%s2 + $0xb0] sm:$0xff]
    %v310 = vld [vmem:[%s2 + $0xb8] sm:$0xff]
    %v311 = vld [vmem:[%s2 + $0xc0] sm:$0xff]
    %v312 = vld [vmem:[%s2 + $0xc8] sm:$0xff]
    %v313 = vld [vmem:[%s2 + $0xd0] sm:$0xff]
    %v314 = vld [vmem:[%s2 + $0xd8] sm:$0xff]
    %v315 = vld [vmem:[%s2 + $0xe0] sm:$0xff]
    %v316 = vld [vmem:[%s2 + $0xe8] sm:$0xff]
    %v317 = vld [vmem:[%s2 + $0xf0] sm:$0xff]
    %v318 = vld [vmem:[%s2 + $0xf8] sm:$0xff]
    %v319 = vld [vmem:[%s2 + $0x100] sm:$0xff]
    %v320 = vld [vmem:[%s2 + $0x108] sm:$0xff]
    %v321 = vld [vmem:[%s2 + $0x110] sm:$0xff]
    %v322 = vld [vmem:[%s2 + $0x118] sm:$0xff]
    %v323 = vld [vmem:[%s2 + $0x120] sm:$0xff]
    %v324 = vld [vmem:[%s2 + $0x128] sm:$0xff]
    %v325 = vld [vmem:[%s2 + $0x130] sm:$0xff]
    %v326 = vld [vmem:[%s2 + $0x138] sm:$0xff]
    %v327 = vld [vmem:[%s2 + $0x140] sm:$0xff]
    %v328 = vld [vmem:[%s2 + $0x148] sm:$0xff]
    %v329 = vld [vmem:[%s2 + $0x150] sm:$0xff]
    %v330 = vld [vmem:[%s2 + $0x158] sm:$0xff]
    %v331 = vld [vmem:[%s2 + $0x160] sm:$0xff]
    %v332 = vld [vmem:[%s2 + $0x168] sm:$0xff]
    %v333 = vld [vmem:[%s2 + $0x170] sm:$0xff]
    %v334 = vld [vmem:[%s2 + $0x178] sm:$0xff]
    %v335 = vld [vmem:[%s2 + $0x180] sm:$0xff]
    %v336 = vld [vmem:[%s2 + $0x188] sm:$0xff]
    %v337 = vld [vmem:[%s2 + $0x190] sm:$0xff]
    %v338 = vld [vmem:[%s2 + $0x198] sm:$0xff]
    %v339 = vld [vmem:[%s2 + $0x1a0] sm:$0xff]
    %v340 = vld [vmem:[%s2 + $0x1a8] sm:$0xff]
    %v341 = vld [vmem:[%s2 + $0x1b0] sm:$0xff]
    %v342 = vld [vmem:[%s2 + $0x1b8] sm:$0xff]
    %v343 = vld [vmem:[%s2 + $0x1c0] sm:$0xff]
    %v344 = vld [vmem:[%s2 + $0x1c8] sm:$0xff]
    %v345 = vld [vmem:[%s2 + $0x1d0] sm:$0xff]
    %v346 = vld [vmem:[%s2 + $0x1d8] sm:$0xff]
    %v347 = vld [vmem:[%s2 + $0x1e0] sm:$0xff]
    %v348 = vld [vmem:[%s2 + $0x1e8] sm:$0xff]
    %v349 = vld [vmem:[%s2 + $0x1f0] sm:$0xff]
    %v350 = vld [vmem:[%s2 + $0x1f8] sm:$0xff]
    %v351 = vld [vmem:[%s2 + $0x200] sm:$0xff]
    %v352 = vld [vmem:[%s2 + $0x208] sm:$0xff]
    %v353 = vld [vmem:[%s2 + $0x210] sm:$0xff]
    %v354 = vld [vmem:[%s2 + $0x218] sm:$0xff]
    %v355 = vld [vmem:[%s2 + $0x220] sm:$0xff]
    %v356 = vld [vmem:[%s2 + $0x228] sm:$0xff]
    %v357 = vld [vmem:[%s2 + $0x230] sm:$0xff]
    %v358 = vld [vmem:[%s2 + $0x238] sm:$0xff]
    %v359 = vld [vmem:[%s2 + $0x240] sm:$0xff]
    %v360 = vld [vmem:[%s2 + $0x248] sm:$0xff]
    %v361 = vld [vmem:[%s2 + $0x250] sm:$0xff]
    %v362 = vld [vmem:[%s2 + $0x258] sm:$0xff]
    %v363 = vld [vmem:[%s2 + $0x260] sm:$0xff]
    %v364 = vld [vmem:[%s2 + $0x268] sm:$0xff]
    %v365 = vld [vmem:[%s2 + $0x270] sm:$0xff]
    %v366 = vld [vmem:[%s2 + $0x278] sm:$0xff]
    %v367 = vld [vmem:[%s2 + $0x280] sm:$0xff]
    %v368 = vld [vmem:[%s2 + $0x288] sm:$0xff]
    %v369 = vld [vmem:[%s2 + $0x290] sm:$0xff]
    %v370 = vld [vmem:[%s2 + $0x298] sm:$0xff]
    %v371 = vld [vmem:[%s2 + $0x2a0] sm:$0xff]
    %v372 = vld [vmem:[%s2 + $0x2a8] sm:$0xff]
    %v373 = vld [vmem:[%s2 + $0x2b0] sm:$0xff]
    %v374 = vld [vmem:[%s2 + $0x2b8] sm:$0xff]
    %v375 = vld [vmem:[%s2 + $0x2c0] sm:$0xff]
    %v376 = vld [vmem:[%s2 + $0x2c8] sm:$0xff]
    %v377 = vld [vmem:[%s2 + $0x2d0] sm:$0xff]
    %v378 = vld [vmem:[%s2 + $0x2d8] sm:$0xff]
    %v379 = vld [vmem:[%s2 + $0x2e0] sm:$0xff]
    %v380 = vld [vmem:[%s2 + $0x2e8] sm:$0xff]
    %v381 = vld [vmem:[%s2 + $0x2f0] sm:$0xff]
    %v382 = vld [vmem:[%s2 + $0x2f8] sm:$0xff]
    %v383 = vld [vmem:[%s2 + $0x300] sm:$0xff]
    %v384 = vld [vmem:[%s2 + $0x308] sm:$0xff]
    %v385 = vld [vmem:[%s2 + $0x310] sm:$0xff]
    %v386 = vld [vmem:[%s2 + $0x318] sm:$0xff]
    %v387 = vld [vmem:[%s2 + $0x320] sm:$0xff]
    %v388 = vld [vmem:[%s2 + $0x328] sm:$0xff]
    %v389 = vld [vmem:[%s2 + $0x330] sm:$0xff]
    %v390 = vld [vmem:[%s2 + $0x338] sm:$0xff]
    %v391 = vld [vmem:[%s2 + $0x340] sm:$0xff]
    %v392 = vld [vmem:[%s2 + $0x348] sm:$0xff]
    %v393 = vld [vmem:[%s2 + $0x350] sm:$0xff]
    %v394 = vld [vmem:[%s2 + $0x358] sm:$0xff]
    %v395 = vld [vmem:[%s2 + $0x360] sm:$0xff]
    %v396 = vld [vmem:[%s2 + $0x368] sm:$0xff]
    %v397 = vld [vmem:[%s2 + $0x370] sm:$0xff]
    %v398 = vld [vmem:[%s2 + $0x378] sm:$0xff]
    %v399 = vld [vmem:[%s2 + $0x380] sm:$0xff]
    %v400 = vld [vmem:[%s2 + $0x388] sm:$0xff]
    %v401 = vld [vmem:[%s2 + $0x390] sm:$0xff]
    %v402 = vld [vmem:[%s2 + $0x398] sm:$0xff]
    %v403 = vld [vmem:[%s2 + $0x3a0] sm:$0xff]
    %v404 = vld [vmem:[%s2 + $0x3a8] sm:$0xff]
    %v405 = vld [vmem:[%s2 + $0x3b0] sm:$0xff]
    %v406 = vld [vmem:[%s2 + $0x3b8] sm:$0xff]
    %v407 = vld [vmem:[%s2 + $0x3c0] sm:$0xff]
    %v408 = vld [vmem:[%s2 + $0x3c8] sm:$0xff]
    %v409 = vld [vmem:[%s2 + $0x3d0] sm:$0xff]
    %v410 = vld [vmem:[%s2 + $0x3d8] sm:$0xff]
    %v411 = vld [vmem:[%s2 + $0x3e0] sm:$0xff]
    %v412 = vld [vmem:[%s2 + $0x3e8] sm:$0xff]
    %v413 = vld [vmem:[%s2 + $0x3f0] sm:$0xff]
    %v414 = vld [vmem:[%s2 + $0x3f8] sm:$0xff]
    %v415 = vmul.f32 %v287, 0.001
    %v416 = vmul.f32 %v288, 0.001
    %v417 = vmul.f32 %v289, 0.001
    %v418 = vmul.f32 %v290, 0.001
    %v419 = vmul.f32 %v291, 0.001
    %v420 = vmul.f32 %v292, 0.001
    %v421 = vmul.f32 %v293, 0.001
    %v422 = vmul.f32 %v294, 0.001
    %v423 = vmul.f32 %v295, 0.001
    %v424 = vmul.f32 %v296, 0.001
    %v425 = vmul.f32 %v297, 0.001
    %v426 = vmul.f32 %v298, 0.001
    %v427 = vmul.f32 %v299, 0.001
    %v428 = vmul.f32 %v300, 0.001
    %v429 = vmul.f32 %v301, 0.001
    %v430 = vmul.f32 %v302, 0.001
    %v431 = vmul.f32 %v303, 0.001
    %v432 = vmul.f32 %v304, 0.001
    %v433 = vmul.f32 %v305, 0.001
    %v434 = vmul.f32 %v306, 0.001
    %v435 = vmul.f32 %v307, 0.001
    %v436 = vmul.f32 %v308, 0.001
    %v437 = vmul.f32 %v309, 0.001
    %v438 = vmul.f32 %v310, 0.001
    %v439 = vmul.f32 %v311, 0.001
    %v440 = vmul.f32 %v312, 0.001
    %v441 = vmul.f32 %v313, 0.001
    %v442 = vmul.f32 %v314, 0.001
    %v443 = vmul.f32 %v315, 0.001
    %v444 = vmul.f32 %v316, 0.001
    %v445 = vmul.f32 %v317, 0.001
    %v446 = vmul.f32 %v318, 0.001
    %v447 = vmul.f32 %v319, 0.001
    %v448 = vmul.f32 %v320, 0.001
    %v449 = vmul.f32 %v321, 0.001
    %v450 = vmul.f32 %v322, 0.001
    %v451 = vmul.f32 %v323, 0.001
    %v452 = vmul.f32 %v324, 0.001
    %v453 = vmul.f32 %v325, 0.001
    %v454 = vmul.f32 %v326, 0.001
    %v455 = vmul.f32 %v327, 0.001
    %v456 = vmul.f32 %v328, 0.001
    %v457 = vmul.f32 %v329, 0.001
    %v458 = vmul.f32 %v330, 0.001
    %v459 = vmul.f32 %v331, 0.001
    %v460 = vmul.f32 %v332, 0.001
    %v461 = vmul.f32 %v333, 0.001
    %v462 = vmul.f32 %v334, 0.001
    %v463 = vmul.f32 %v335, 0.001
    %v464 = vmul.f32 %v336, 0.001
    %v465 = vmul.f32 %v337, 0.001
    %v466 = vmul.f32 %v338, 0.001
    %v467 = vmul.f32 %v339, 0.001
    %v468 = vmul.f32 %v340, 0.001
    %v469 = vmul.f32 %v341, 0.001
    %v470 = vmul.f32 %v342, 0.001
    %v471 = vmul.f32 %v343, 0.001
    %v472 = vmul.f32 %v344, 0.001
    %v473 = vmul.f32 %v345, 0.001
    %v474 = vmul.f32 %v346, 0.001
    %v475 = vmul.f32 %v347, 0.001
    %v476 = vmul.f32 %v348, 0.001
    %v477 = vmul.f32 %v349, 0.001
    %v478 = vmul.f32 %v350, 0.001
    %v479 = vmul.f32 %v351, 0.001
    %v480 = vmul.f32 %v352, 0.001
    %v481 = vmul.f32 %v353, 0.001
    %v482 = vmul.f32 %v354, 0.001
    %v483 = vmul.f32 %v355, 0.001
    %v484 = vmul.f32 %v356, 0.001
    %v485 = vmul.f32 %v357, 0.001
    %v486 = vmul.f32 %v358, 0.001
    %v487 = vmul.f32 %v359, 0.001
    %v488 = vmul.f32 %v360, 0.001
    %v489 = vmul.f32 %v361, 0.001
    %v490 = vmul.f32 %v362, 0.001
    %v491 = vmul.f32 %v363, 0.001
    %v492 = vmul.f32 %v364, 0.001
    %v493 = vmul.f32 %v365, 0.001
    %v494 = vmul.f32 %v366, 0.001
    %v495 = vmul.f32 %v367, 0.001
    %v496 = vmul.f32 %v368, 0.001
    %v497 = vmul.f32 %v369, 0.001
    %v498 = vmul.f32 %v370, 0.001
    %v499 = vmul.f32 %v371, 0.001
    %v500 = vmul.f32 %v372, 0.001
    %v501 = vmul.f32 %v373, 0.001
    %v502 = vmul.f32 %v374, 0.001
    %v503 = vmul.f32 %v375, 0.001
    %v504 = vmul.f32 %v376, 0.001
    %v505 = vmul.f32 %v377, 0.001
    %v506 = vmul.f32 %v378, 0.001
    %v507 = vmul.f32 %v379, 0.001
    %v508 = vmul.f32 %v380, 0.001
    %v509 = vmul.f32 %v381, 0.001
    %v510 = vmul.f32 %v382, 0.001
    %v511 = vmul.f32 %v383, 0.001
    %v512 = vmul.f32 %v384, 0.001
    %v513 = vmul.f32 %v385, 0.001
    %v514 = vmul.f32 %v386, 0.001
    %v515 = vmul.f32 %v387, 0.001
    %v516 = vmul.f32 %v388, 0.001
    %v517 = vmul.f32 %v389, 0.001
    %v518 = vmul.f32 %v390, 0.001
    %v519 = vmul.f32 %v391, 0.001
    %v520 = vmul.f32 %v392, 0.001
    %v521 = vmul.f32 %v393, 0.001
    %v522 = vmul.f32 %v394, 0.001
    %v523 = vmul.f32 %v395, 0.001
    %v524 = vmul.f32 %v396, 0.001
    %v525 = vmul.f32 %v397, 0.001
    %v526 = vmul.f32 %v398, 0.001
    %v527 = vmul.f32 %v399, 0.001
    %v528 = vmul.f32 %v400, 0.001
    %v529 = vmul.f32 %v401, 0.001
    %v530 = vmul.f32 %v402, 0.001
    %v531 = vmul.f32 %v403, 0.001
    %v532 = vmul.f32 %v404, 0.001
    %v533 = vmul.f32 %v405, 0.001
    %v534 = vmul.f32 %v406, 0.001
    %v535 = vmul.f32 %v407, 0.001
    %v536 = vmul.f32 %v408, 0.001
    %v537 = vmul.f32 %v409, 0.001
    %v538 = vmul.f32 %v410, 0.001
    %v539 = vmul.f32 %v411, 0.001
    %v540 = vmul.f32 %v412, 0.001
    %v541 = vmul.f32 %v413, 0.001
    %v542 = vmul.f32 %v414, 0.001
    %v543 = vadd.f32 %v159, %v415
    %v544 = vadd.f32 %v160, %v416
    %v545 = vadd.f32 %v161, %v417
    %v546 = vadd.f32 %v162, %v418
    %v547 = vadd.f32 %v163, %v419
    %v548 = vadd.f32 %v164, %v420
    %v549 = vadd.f32 %v165, %v421
    %v550 = vadd.f32 %v166, %v422
    %v551 = vadd.f32 %v167, %v423
    %v552 = vadd.f32 %v168, %v424
    %v553 = vadd.f32 %v169, %v425
    %v554 = vadd.f32 %v170, %v426
    %v555 = vadd.f32 %v171, %v427
    %v556 = vadd.f32 %v172, %v428
    %v557 = vadd.f32 %v173, %v429
    %v558 = vadd.f32 %v174, %v430
    %v559 = vadd.f32 %v175, %v431
    %v560 = vadd.f32 %v176, %v432
    %v561 = vadd.f32 %v177, %v433
    %v562 = vadd.f32 %v178, %v434
    %v563 = vadd.f32 %v179, %v435
    %v564 = vadd.f32 %v180, %v436
    %v565 = vadd.f32 %v181, %v437
    %v566 = vadd.f32 %v182, %v438
    %v567 = vadd.f32 %v183, %v439
    %v568 = vadd.f32 %v184, %v440
    %v569 = vadd.f32 %v185, %v441
    %v570 = vadd.f32 %v186, %v442
    %v571 = vadd.f32 %v187, %v443
    %v572 = vadd.f32 %v188, %v444
    %v573 = vadd.f32 %v189, %v445
    %v574 = vadd.f32 %v190, %v446
    %v575 = vadd.f32 %v191, %v447
    %v576 = vadd.f32 %v192, %v448
    %v577 = vadd.f32 %v193, %v449
    %v578 = vadd.f32 %v194, %v450
    %v579 = vadd.f32 %v195, %v451
    %v580 = vadd.f32 %v196, %v452
    %v581 = vadd.f32 %v197, %v453
    %v582 = vadd.f32 %v198, %v454
    %v583 = vadd.f32 %v199, %v455
    %v584 = vadd.f32 %v200, %v456
    %v585 = vadd.f32 %v201, %v457
    %v586 = vadd.f32 %v202, %v458
    %v587 = vadd.f32 %v203, %v459
    %v588 = vadd.f32 %v204, %v460
    %v589 = vadd.f32 %v205, %v461
    %v590 = vadd.f32 %v206, %v462
    %v591 = vadd.f32 %v207, %v463
    %v592 = vadd.f32 %v208, %v464
    %v593 = vadd.f32 %v209, %v465
    %v594 = vadd.f32 %v210, %v466
    %v595 = vadd.f32 %v211, %v467
    %v596 = vadd.f32 %v212, %v468
    %v597 = vadd.f32 %v213, %v469
    %v598 = vadd.f32 %v214, %v470
    %v599 = vadd.f32 %v215, %v471
    %v600 = vadd.f32 %v216, %v472
    %v601 = vadd.f32 %v217, %v473
    %v602 = vadd.f32 %v218, %v474
    %v603 = vadd.f32 %v219, %v475
    %v604 = vadd.f32 %v220, %v476
    %v605 = vadd.f32 %v221, %v477
    %v606 = vadd.f32 %v222, %v478
    %v607 = vadd.f32 %v223, %v479
    %v608 = vadd.f32 %v224, %v480
    %v609 = vadd.f32 %v225, %v481
    %v610 = vadd.f32 %v226, %v482
    %v611 = vadd.f32 %v227, %v483
    %v612 = vadd.f32 %v228, %v484
    %v613 = vadd.f32 %v229, %v485
    %v614 = vadd.f32 %v230, %v486
    %v615 = vadd.f32 %v231, %v487
    %v616 = vadd.f32 %v232, %v488
    %v617 = vadd.f32 %v233, %v489
    %v618 = vadd.f32 %v234, %v490
    %v619 = vadd.f32 %v235, %v491
    %v620 = vadd.f32 %v236, %v492
    %v621 = vadd.f32 %v237, %v493
    %v622 = vadd.f32 %v238, %v494
    %v623 = vadd.f32 %v239, %v495
    %v624 = vadd.f32 %v240, %v496
    %v625 = vadd.f32 %v241, %v497
    %v626 = vadd.f32 %v242, %v498
    %v627 = vadd.f32 %v243, %v499
    %v628 = vadd.f32 %v244, %v500
    %v629 = vadd.f32 %v245, %v501
    %v630 = vadd.f32 %v246, %v502
    %v631 = vadd.f32 %v247, %v503
    %v632 = vadd.f32 %v248, %v504
    %v633 = vadd.f32 %v249, %v505
    %v634 = vadd.f32 %v250, %v506
    %v635 = vadd.f32 %v251, %v507
    %v636 = vadd.f32 %v252, %v508
    %v637 = vadd.f32 %v253, %v509
    %v638 = vadd.f32 %v254, %v510
    %v639 = vadd.f32 %v255, %v511
    %v640 = vadd.f32 %v256, %v512
    %v641 = vadd.f32 %v257, %v513
    %v642 = vadd.f32 %v258, %v514
    %v643 = vadd.f32 %v259, %v515
    %v644 = vadd.f32 %v260, %v516
    %v645 = vadd.f32 %v261, %v517
    %v646 = vadd.f32 %v262, %v518
    %v647 = vadd.f32 %v263, %v519
    %v648 = vadd.f32 %v264, %v520
    %v649 = vadd.f32 %v265, %v521
    %v650 = vadd.f32 %v266, %v522
    %v651 = vadd.f32 %v267, %v523
    %v652 = vadd.f32 %v268, %v524
    %v653 = vadd.f32 %v269, %v525
    %v654 = vadd.f32 %v270, %v526
    %v655 = vadd.f32 %v271, %v527
    %v656 = vadd.f32 %v272, %v528
    %v657 = vadd.f32 %v273, %v529
    %v658 = vadd.f32 %v274, %v530
    %v659 = vadd.f32 %v275, %v531
    %v660 = vadd.f32 %v276, %v532
    %v661 = vadd.f32 %v277, %v533
    %v662 = vadd.f32 %v278, %v534
    %v663 = vadd.f32 %v279, %v535
    %v664 = vadd.f32 %v280, %v536
    %v665 = vadd.f32 %v281, %v537
    %v666 = vadd.f32 %v282, %v538
    %v667 = vadd.f32 %v283, %v539
    %v668 = vadd.f32 %v284, %v540
    %v669 = vadd.f32 %v285, %v541
    %v670 = vadd.f32 %v286, %v542
    %671 = vst [vmem:[%s8] sm:$0xff] %v543
    %672 = vst [vmem:[%s8 + $0x8] sm:$0xff] %v544
    %673 = vst [vmem:[%s8 + $0x10] sm:$0xff] %v545
    %674 = vst [vmem:[%s8 + $0x18] sm:$0xff] %v546
    %675 = vst [vmem:[%s8 + $0x20] sm:$0xff] %v547
    %676 = vst [vmem:[%s8 + $0x28] sm:$0xff] %v548
    %677 = vst [vmem:[%s8 + $0x30] sm:$0xff] %v549
    %678 = vst [vmem:[%s8 + $0x38] sm:$0xff] %v550
    %679 = vst [vmem:[%s8 + $0x40] sm:$0xff] %v551
    %680 = vst [vmem:[%s8 + $0x48] sm:$0xff] %v552
    %681 = vst [vmem:[%s8 + $0x50] sm:$0xff] %v553
    %682 = vst [vmem:[%s8 + $0x58] sm:$0xff] %v554
    %683 = vst [vmem:[%s8 + $0x60] sm:$0xff] %v555
    %684 = vst [vmem:[%s8 + $0x68] sm:$0xff] %v556
    %685 = vst [vmem:[%s8 + $0x70] sm:$0xff] %v557
    %686 = vst [vmem:[%s8 + $0x78] sm:$0xff] %v558
    %687 = vst [vmem:[%s8 + $0x80] sm:$0xff] %v559
    %688 = vst [vmem:[%s8 + $0x88] sm:$0xff] %v560
    %689 = vst [vmem:[%s8 + $0x90] sm:$0xff] %v561
    %690 = vst [vmem:[%s8 + $0x98] sm:$0xff] %v562
    %691 = vst [vmem:[%s8 + $0xa0] sm:$0xff] %v563
    %692 = vst [vmem:[%s8 + $0xa8] sm:$0xff] %v564
    %693 = vst [vmem:[%s8 + $0xb0] sm:$0xff] %v565
    %694 = vst [vmem:[%s8 + $0xb8] sm:$0xff] %v566
    %695 = vst [vmem:[%s8 + $0xc0] sm:$0xff] %v567
    %696 = vst [vmem:[%s8 + $0xc8] sm:$0xff] %v568
    %697 = vst [vmem:[%s8 + $0xd0] sm:$0xff] %v569
    %698 = vst [vmem:[%s8 + $0xd8] sm:$0xff] %v570
    %699 = vst [vmem:[%s8 + $0xe0] sm:$0xff] %v571
    %700 = vst [vmem:[%s8 + $0xe8] sm:$0xff] %v572
    %701 = vst [vmem:[%s8 + $0xf0] sm:$0xff] %v573
    %702 = vst [vmem:[%s8 + $0xf8] sm:$0xff] %v574
    %703 = vst [vmem:[%s8 + $0x100] sm:$0xff] %v575
    %704 = vst [vmem:[%s8 + $0x108] sm:$0xff] %v576
    %705 = vst [vmem:[%s8 + $0x110] sm:$0xff] %v577
    %706 = vst [vmem:[%s8 + $0x118] sm:$0xff] %v578
    %707 = vst [vmem:[%s8 + $0x120] sm:$0xff] %v579
    %708 = vst [vmem:[%s8 + $0x128] sm:$0xff] %v580
    %709 = vst [vmem:[%s8 + $0x130] sm:$0xff] %v581
    %710 = vst [vmem:[%s8 + $0x138] sm:$0xff] %v582
    %711 = vst [vmem:[%s8 + $0x140] sm:$0xff] %v583
    %712 = vst [vmem:[%s8 + $0x148] sm:$0xff] %v584
    %713 = vst [vmem:[%s8 + $0x150] sm:$0xff] %v585
    %714 = vst [vmem:[%s8 + $0x158] sm:$0xff] %v586
    %715 = vst [vmem:[%s8 + $0x160] sm:$0xff] %v587
    %716 = vst [vmem:[%s8 + $0x168] sm:$0xff] %v588
    %717 = vst [vmem:[%s8 + $0x170] sm:$0xff] %v589
    %718 = vst [vmem:[%s8 + $0x178] sm:$0xff] %v590
    %719 = vst [vmem:[%s8 + $0x180] sm:$0xff] %v591
    %720 = vst [vmem:[%s8 + $0x188] sm:$0xff] %v592
    %721 = vst [vmem:[%s8 + $0x190] sm:$0xff] %v593
    %722 = vst [vmem:[%s8 + $0x198] sm:$0xff] %v594
    %723 = vst [vmem:[%s8 + $0x1a0] sm:$0xff] %v595
    %724 = vst [vmem:[%s8 + $0x1a8] sm:$0xff] %v596
    %725 = vst [vmem:[%s8 + $0x1b0] sm:$0xff] %v597
    %726 = vst [vmem:[%s8 + $0x1b8] sm:$0xff] %v598
    %727 = vst [vmem:[%s8 + $0x1c0] sm:$0xff] %v599
    %728 = vst [vmem:[%s8 + $0x1c8] sm:$0xff] %v600
    %729 = vst [vmem:[%s8 + $0x1d0] sm:$0xff] %v601
    %730 = vst [vmem:[%s8 + $0x1d8] sm:$0xff] %v602
    %731 = vst [vmem:[%s8 + $0x1e0] sm:$0xff] %v603
    %732 = vst [vmem:[%s8 + $0x1e8] sm:$0xff] %v604
    %733 = vst [vmem:[%s8 + $0x1f0] sm:$0xff] %v605
    %734 = vst [vmem:[%s8 + $0x1f8] sm:$0xff] %v606
    %735 = vst [vmem:[%s8 + $0x200] sm:$0xff] %v607
    %736 = vst [vmem:[%s8 + $0x208] sm:$0xff] %v608
    %737 = vst [vmem:[%s8 + $0x210] sm:$0xff] %v609
    %738 = vst [vmem:[%s8 + $0x218] sm:$0xff] %v610
    %739 = vst [vmem:[%s8 + $0x220] sm:$0xff] %v611
    %740 = vst [vmem:[%s8 + $0x228] sm:$0xff] %v612
    %741 = vst [vmem:[%s8 + $0x230] sm:$0xff] %v613
    %742 = vst [vmem:[%s8 + $0x238] sm:$0xff] %v614
    %743 = vst [vmem:[%s8 + $0x240] sm:$0xff] %v615
    %744 = vst [vmem:[%s8 + $0x248] sm:$0xff] %v616
    %745 = vst [vmem:[%s8 + $0x250] sm:$0xff] %v617
    %746 = vst [vmem:[%s8 + $0x258] sm:$0xff] %v618
    %747 = vst [vmem:[%s8 + $0x260] sm:$0xff] %v619
    %748 = vst [vmem:[%s8 + $0x268] sm:$0xff] %v620
    %749 = vst [vmem:[%s8 + $0x270] sm:$0xff] %v621
    %750 = vst [vmem:[%s8 + $0x278] sm:$0xff] %v622
    %751 = vst [vmem:[%s8 + $0x280] sm:$0xff] %v623
    %752 = vst [vmem:[%s8 + $0x288] sm:$0xff] %v624
    %753 = vst [vmem:[%s8 + $0x290] sm:$0xff] %v625
    %754 = vst [vmem:[%s8 + $0x298] sm:$0xff] %v626
    %755 = vst [vmem:[%s8 + $0x2a0] sm:$0xff] %v627
    %756 = vst [vmem:[%s8 + $0x2a8] sm:$0xff] %v628
    %757 = vst [vmem:[%s8 + $0x2b0] sm:$0xff] %v629
    %758 = vst [vmem:[%s8 + $0x2b8] sm:$0xff] %v630
    %759 = vst [vmem:[%s8 + $0x2c0] sm:$0xff] %v631
    %760 = vst [vmem:[%s8 + $0x2c8] sm:$0xff] %v632
    %761 = vst [vmem:[%s8 + $0x2d0] sm:$0xff] %v633
    %762 = vst [vmem:[%s8 + $0x2d8] sm:$0xff] %v634
    %763 = vst [vmem:[%s8 + $0x2e0] sm:$0xff] %v635
    %764 = vst [vmem:[%s8 + $0x2e8] sm:$0xff] %v636
    %765 = vst [vmem:[%s8 + $0x2f0] sm:$0xff] %v637
    %766 = vst [vmem:[%s8 + $0x2f8] sm:$0xff] %v638
    %767 = vst [vmem:[%s8 + $0x300] sm:$0xff] %v639
    %768 = vst [vmem:[%s8 + $0x308] sm:$0xff] %v640
    %769 = vst [vmem:[%s8 + $0x310] sm:$0xff] %v641
    %770 = vst [vmem:[%s8 + $0x318] sm:$0xff] %v642
    %771 = vst [vmem:[%s8 + $0x320] sm:$0xff] %v643
    %772 = vst [vmem:[%s8 + $0x328] sm:$0xff] %v644
    %773 = vst [vmem:[%s8 + $0x330] sm:$0xff] %v645
    %774 = vst [vmem:[%s8 + $0x338] sm:$0xff] %v646
    %775 = vst [vmem:[%s8 + $0x340] sm:$0xff] %v647
    %776 = vst [vmem:[%s8 + $0x348] sm:$0xff] %v648
    %777 = vst [vmem:[%s8 + $0x350] sm:$0xff] %v649
    %778 = vst [vmem:[%s8 + $0x358] sm:$0xff] %v650
    %779 = vst [vmem:[%s8 + $0x360] sm:$0xff] %v651
    %780 = vst [vmem:[%s8 + $0x368] sm:$0xff] %v652
    %781 = vst [vmem:[%s8 + $0x370] sm:$0xff] %v653
    %782 = vst [vmem:[%s8 + $0x378] sm:$0xff] %v654
    %783 = vst [vmem:[%s8 + $0x380] sm:$0xff] %v655
    %784 = vst [vmem:[%s8 + $0x388] sm:$0xff] %v656
    %785 = vst [vmem:[%s8 + $0x390] sm:$0xff] %v657
    %786 = vst [vmem:[%s8 + $0x398] sm:$0xff] %v658
    %787 = vst [vmem:[%s8 + $0x3a0] sm:$0xff] %v659
    %788 = vst [vmem:[%s8 + $0x3a8] sm:$0xff] %v660
    %789 = vst [vmem:[%s8 + $0x3b0] sm:$0xff] %v661
    %790 = vst [vmem:[%s8 + $0x3b8] sm:$0xff] %v662
    %791 = vst [vmem:[%s8 + $0x3c0] sm:$0xff] %v663
    %792 = vst [vmem:[%s8 + $0x3c8] sm:$0xff] %v664
    %793 = vst [vmem:[%s8 + $0x3d0] sm:$0xff] %v665
    %794 = vst [vmem:[%s8 + $0x3d8] sm:$0xff] %v666
    %795 = vst [vmem:[%s8 + $0x3e0] sm:$0xff] %v667
    %796 = vst [vmem:[%s8 + $0x3e8] sm:$0xff] %v668
    %797 = vst [vmem:[%s8 + $0x3f0] sm:$0xff] %v669
    %798 = vst [vmem:[%s8 + $0x3f8] sm:$0xff] %v670
    %v799 = vld [vmem:[%s0] sm:$0xff]
    %v800 = vld [vmem:[%s0 + $0x8] sm:$0xff]
    %v801 = vld [vmem:[%s0 + $0x10] sm:$0xff]
    %v802 = vld [vmem:[%s0 + $0x18] sm:$0xff]
    %v803 = vld [vmem:[%s0 + $0x20] sm:$0xff]
    %v804 = vld [vmem:[%s0 + $0x28] sm:$0xff]
    %v805 = vld [vmem:[%s0 + $0x30] sm:$0xff]
    %v806 = vld [vmem:[%s0 + $0x38] sm:$0xff]
    %v807 = vpack.c.bf16 %v799, %v799
    %v808 = vpack.c.bf16 %v800, %v800
    %v809 = vpack.c.bf16 %v801, %v801
    %v810 = vpack.c.bf16 %v802, %v802
    %v811 = vpack.c.bf16 %v803, %v803
    %v812 = vpack.c.bf16 %v804, %v804
    %v813 = vpack.c.bf16 %v805, %v805
    %v814 = vpack.c.bf16 %v806, %v806
    %v815 = vld [vmem:[%s2] sm:$0xff]
    %v816 = vld [vmem:[%s2 + $0x8] sm:$0xff]
    %v817 = vld [vmem:[%s2 + $0x10] sm:$0xff]
    %v818 = vld [vmem:[%s2 + $0x18] sm:$0xff]
    %v819 = vld [vmem:[%s2 + $0x20] sm:$0xff]
    %v820 = vld [vmem:[%s2 + $0x28] sm:$0xff]
    %v821 = vld [vmem:[%s2 + $0x30] sm:$0xff]
    %v822 = vld [vmem:[%s2 + $0x38] sm:$0xff]
    %v823 = vld [vmem:[%s2 + $0x40] sm:$0xff]
    %v824 = vld [vmem:[%s2 + $0x48] sm:$0xff]
    %v825 = vld [vmem:[%s2 + $0x50] sm:$0xff]
    %v826 = vld [vmem:[%s2 + $0x58] sm:$0xff]
    %v827 = vld [vmem:[%s2 + $0x60] sm:$0xff]
    %v828 = vld [vmem:[%s2 + $0x68] sm:$0xff]
    %v829 = vld [vmem:[%s2 + $0x70] sm:$0xff]
    %v830 = vld [vmem:[%s2 + $0x78] sm:$0xff]
    %v831 = vld [vmem:[%s2 + $0x80] sm:$0xff]
    %v832 = vld [vmem:[%s2 + $0x88] sm:$0xff]
    %v833 = vld [vmem:[%s2 + $0x90] sm:$0xff]
    %v834 = vld [vmem:[%s2 + $0x98] sm:$0xff]
    %v835 = vld [vmem:[%s2 + $0xa0] sm:$0xff]
    %v836 = vld [vmem:[%s2 + $0xa8] sm:$0xff]
    %v837 = vld [vmem:[%s2 + $0xb0] sm:$0xff]
    %v838 = vld [vmem:[%s2 + $0xb8] sm:$0xff]
    %v839 = vld [vmem:[%s2 + $0xc0] sm:$0xff]
    %v840 = vld [vmem:[%s2 + $0xc8] sm:$0xff]
    %v841 = vld [vmem:[%s2 + $0xd0] sm:$0xff]
    %v842 = vld [vmem:[%s2 + $0xd8] sm:$0xff]
    %v843 = vld [vmem:[%s2 + $0xe0] sm:$0xff]
    %v844 = vld [vmem:[%s2 + $0xe8] sm:$0xff]
    %v845 = vld [vmem:[%s2 + $0xf0] sm:$0xff]
    %v846 = vld [vmem:[%s2 + $0xf8] sm:$0xff]
    %v847 = vld [vmem:[%s2 + $0x100] sm:$0xff]
    %v848 = vld [vmem:[%s2 + $0x108] sm:$0xff]
    %v849 = vld [vmem:[%s2 + $0x110] sm:$0xff]
    %v850 = vld [vmem:[%s2 + $0x118] sm:$0xff]
    %v851 = vld [vmem:[%s2 + $0x120] sm:$0xff]
    %v852 = vld [vmem:[%s2 + $0x128] sm:$0xff]
    %v853 = vld [vmem:[%s2 + $0x130] sm:$0xff]
    %v854 = vld [vmem:[%s2 + $0x138] sm:$0xff]
    %v855 = vld [vmem:[%s2 + $0x140] sm:$0xff]
    %v856 = vld [vmem:[%s2 + $0x148] sm:$0xff]
    %v857 = vld [vmem:[%s2 + $0x150] sm:$0xff]
    %v858 = vld [vmem:[%s2 + $0x158] sm:$0xff]
    %v859 = vld [vmem:[%s2 + $0x160] sm:$0xff]
    %v860 = vld [vmem:[%s2 + $0x168] sm:$0xff]
    %v861 = vld [vmem:[%s2 + $0x170] sm:$0xff]
    %v862 = vld [vmem:[%s2 + $0x178] sm:$0xff]
    %v863 = vld [vmem:[%s2 + $0x180] sm:$0xff]
    %v864 = vld [vmem:[%s2 + $0x188] sm:$0xff]
    %v865 = vld [vmem:[%s2 + $0x190] sm:$0xff]
    %v866 = vld [vmem:[%s2 + $0x198] sm:$0xff]
    %v867 = vld [vmem:[%s2 + $0x1a0] sm:$0xff]
    %v868 = vld [vmem:[%s2 + $0x1a8] sm:$0xff]
    %v869 = vld [vmem:[%s2 + $0x1b0] sm:$0xff]
    %v870 = vld [vmem:[%s2 + $0x1b8] sm:$0xff]
    %v871 = vld [vmem:[%s2 + $0x1c0] sm:$0xff]
    %v872 = vld [vmem:[%s2 + $0x1c8] sm:$0xff]
    %v873 = vld [vmem:[%s2 + $0x1d0] sm:$0xff]
    %v874 = vld [vmem:[%s2 + $0x1d8] sm:$0xff]
    %v875 = vld [vmem:[%s2 + $0x1e0] sm:$0xff]
    %v876 = vld [vmem:[%s2 + $0x1e8] sm:$0xff]
    %v877 = vld [vmem:[%s2 + $0x1f0] sm:$0xff]
    %v878 = vld [vmem:[%s2 + $0x1f8] sm:$0xff]
    %v879 = vld [vmem:[%s2 + $0x200] sm:$0xff]
    %v880 = vld [vmem:[%s2 + $0x208] sm:$0xff]
    %v881 = vld [vmem:[%s2 + $0x210] sm:$0xff]
    %v882 = vld [vmem:[%s2 + $0x218] sm:$0xff]
    %v883 = vld [vmem:[%s2 + $0x220] sm:$0xff]
    %v884 = vld [vmem:[%s2 + $0x228] sm:$0xff]
    %v885 = vld [vmem:[%s2 + $0x230] sm:$0xff]
    %v886 = vld [vmem:[%s2 + $0x238] sm:$0xff]
    %v887 = vld [vmem:[%s2 + $0x240] sm:$0xff]
    %v888 = vld [vmem:[%s2 + $0x248] sm:$0xff]
    %v889 = vld [vmem:[%s2 + $0x250] sm:$0xff]
    %v890 = vld [vmem:[%s2 + $0x258] sm:$0xff]
    %v891 = vld [vmem:[%s2 + $0x260] sm:$0xff]
    %v892 = vld [vmem:[%s2 + $0x268] sm:$0xff]
    %v893 = vld [vmem:[%s2 + $0x270] sm:$0xff]
    %v894 = vld [vmem:[%s2 + $0x278] sm:$0xff]
    %v895 = vld [vmem:[%s2 + $0x280] sm:$0xff]
    %v896 = vld [vmem:[%s2 + $0x288] sm:$0xff]
    %v897 = vld [vmem:[%s2 + $0x290] sm:$0xff]
    %v898 = vld [vmem:[%s2 + $0x298] sm:$0xff]
    %v899 = vld [vmem:[%s2 + $0x2a0] sm:$0xff]
    %v900 = vld [vmem:[%s2 + $0x2a8] sm:$0xff]
    %v901 = vld [vmem:[%s2 + $0x2b0] sm:$0xff]
    %v902 = vld [vmem:[%s2 + $0x2b8] sm:$0xff]
    %v903 = vld [vmem:[%s2 + $0x2c0] sm:$0xff]
    %v904 = vld [vmem:[%s2 + $0x2c8] sm:$0xff]
    %v905 = vld [vmem:[%s2 + $0x2d0] sm:$0xff]
    %v906 = vld [vmem:[%s2 + $0x2d8] sm:$0xff]
    %v907 = vld [vmem:[%s2 + $0x2e0] sm:$0xff]
    %v908 = vld [vmem:[%s2 + $0x2e8] sm:$0xff]
    %v909 = vld [vmem:[%s2 + $0x2f0] sm:$0xff]
    %v910 = vld [vmem:[%s2 + $0x2f8] sm:$0xff]
    %v911 = vld [vmem:[%s2 + $0x300] sm:$0xff]
    %v912 = vld [vmem:[%s2 + $0x308] sm:$0xff]
    %v913 = vld [vmem:[%s2 + $0x310] sm:$0xff]
    %v914 = vld [vmem:[%s2 + $0x318] sm:$0xff]
    %v915 = vld [vmem:[%s2 + $0x320] sm:$0xff]
    %v916 = vld [vmem:[%s2 + $0x328] sm:$0xff]
    %v917 = vld [vmem:[%s2 + $0x330] sm:$0xff]
    %v918 = vld [vmem:[%s2 + $0x338] sm:$0xff]
    %v919 = vld [vmem:[%s2 + $0x340] sm:$0xff]
    %v920 = vld [vmem:[%s2 + $0x348] sm:$0xff]
    %v921 = vld [vmem:[%s2 + $0x350] sm:$0xff]
    %v922 = vld [vmem:[%s2 + $0x358] sm:$0xff]
    %v923 = vld [vmem:[%s2 + $0x360] sm:$0xff]
    %v924 = vld [vmem:[%s2 + $0x368] sm:$0xff]
    %v925 = vld [vmem:[%s2 + $0x370] sm:$0xff]
    %v926 = vld [vmem:[%s2 + $0x378] sm:$0xff]
    %v927 = vld [vmem:[%s2 + $0x380] sm:$0xff]
    %v928 = vld [vmem:[%s2 + $0x388] sm:$0xff]
    %v929 = vld [vmem:[%s2 + $0x390] sm:$0xff]
    %v930 = vld [vmem:[%s2 + $0x398] sm:$0xff]
    %v931 = vld [vmem:[%s2 + $0x3a0] sm:$0xff]
    %v932 = vld [vmem:[%s2 + $0x3a8] sm:$0xff]
    %v933 = vld [vmem:[%s2 + $0x3b0] sm:$0xff]
    %v934 = vld [vmem:[%s2 + $0x3b8] sm:$0xff]
    %v935 = vld [vmem:[%s2 + $0x3c0] sm:$0xff]
    %v936 = vld [vmem:[%s2 + $0x3c8] sm:$0xff]
    %v937 = vld [vmem:[%s2 + $0x3d0] sm:$0xff]
    %v938 = vld [vmem:[%s2 + $0x3d8] sm:$0xff]
    %v939 = vld [vmem:[%s2 + $0x3e0] sm:$0xff]
    %v940 = vld [vmem:[%s2 + $0x3e8] sm:$0xff]
    %v941 = vld [vmem:[%s2 + $0x3f0] sm:$0xff]
    %v942 = vld [vmem:[%s2 + $0x3f8] sm:$0xff]
    %v943 = vpack.c.bf16 %v816, %v815
    %v944 = vpack.c.bf16 %v818, %v817
    %v945 = vpack.c.bf16 %v820, %v819
    %v946 = vpack.c.bf16 %v822, %v821
    %v947 = vpack.c.bf16 %v824, %v823
    %v948 = vpack.c.bf16 %v826, %v825
    %v949 = vpack.c.bf16 %v828, %v827
    %v950 = vpack.c.bf16 %v830, %v829
    %v951 = vpack.c.bf16 %v832, %v831
    %v952 = vpack.c.bf16 %v834, %v833
    %v953 = vpack.c.bf16 %v836, %v835
    %v954 = vpack.c.bf16 %v838, %v837
    %v955 = vpack.c.bf16 %v840, %v839
    %v956 = vpack.c.bf16 %v842, %v841
    %v957 = vpack.c.bf16 %v844, %v843
    %v958 = vpack.c.bf16 %v846, %v845
    %v959 = vpack.c.bf16 %v848, %v847
    %v960 = vpack.c.bf16 %v850, %v849
    %v961 = vpack.c.bf16 %v852, %v851
    %v962 = vpack.c.bf16 %v854, %v853
    %v963 = vpack.c.bf16 %v856, %v855
    %v964 = vpack.c.bf16 %v858, %v857
    %v965 = vpack.c.bf16 %v860, %v859
    %v966 = vpack.c.bf16 %v862, %v861
    %v967 = vpack.c.bf16 %v864, %v863
    %v968 = vpack.c.bf16 %v866, %v865
    %v969 = vpack.c.bf16 %v868, %v867
    %v970 = vpack.c.bf16 %v870, %v869
    %v971 = vpack.c.bf16 %v872, %v871
    %v972 = vpack.c.bf16 %v874, %v873
    %v973 = vpack.c.bf16 %v876, %v875
    %v974 = vpack.c.bf16 %v878, %v877
    %v975 = vpack.c.bf16 %v880, %v879
    %v976 = vpack.c.bf16 %v882, %v881
    %v977 = vpack.c.bf16 %v884, %v883
    %v978 = vpack.c.bf16 %v886, %v885
    %v979 = vpack.c.bf16 %v888, %v887
    %v980 = vpack.c.bf16 %v890, %v889
    %v981 = vpack.c.bf16 %v892, %v891
    %v982 = vpack.c.bf16 %v894, %v893
    %v983 = vpack.c.bf16 %v896, %v895
    %v984 = vpack.c.bf16 %v898, %v897
    %v985 = vpack.c.bf16 %v900, %v899
    %v986 = vpack.c.bf16 %v902, %v901
    %v987 = vpack.c.bf16 %v904, %v903
    %v988 = vpack.c.bf16 %v906, %v905
    %v989 = vpack.c.bf16 %v908, %v907
    %v990 = vpack.c.bf16 %v910, %v909
    %v991 = vpack.c.bf16 %v912, %v911
    %v992 = vpack.c.bf16 %v914, %v913
    %v993 = vpack.c.bf16 %v916, %v915
    %v994 = vpack.c.bf16 %v918, %v917
    %v995 = vpack.c.bf16 %v920, %v919
    %v996 = vpack.c.bf16 %v922, %v921
    %v997 = vpack.c.bf16 %v924, %v923
    %v998 = vpack.c.bf16 %v926, %v925
    %v999 = vpack.c.bf16 %v928, %v927
    %v1000 = vpack.c.bf16 %v930, %v929
    %v1001 = vpack.c.bf16 %v932, %v931
    %v1002 = vpack.c.bf16 %v934, %v933
    %v1003 = vpack.c.bf16 %v936, %v935
    %v1004 = vpack.c.bf16 %v938, %v937
    %v1005 = vpack.c.bf16 %v940, %v939
    %v1006 = vpack.c.bf16 %v942, %v941
    %v1007 = vld [vmem:[%s1] sm:$0xff]
    %v1008 = vld [vmem:[%s1 + $0x8] sm:$0xff]
    %v1009 = vld [vmem:[%s1 + $0x10] sm:$0xff]
    %v1010 = vld [vmem:[%s1 + $0x18] sm:$0xff]
    %v1011 = vld [vmem:[%s1 + $0x20] sm:$0xff]
    %v1012 = vld [vmem:[%s1 + $0x28] sm:$0xff]
    %v1013 = vld [vmem:[%s1 + $0x30] sm:$0xff]
    %v1014 = vld [vmem:[%s1 + $0x38] sm:$0xff]
    %v1015 = vpack.c.bf16 %v1007, %v1007
    %v1016 = vpack.c.bf16 %v1008, %v1008
    %v1017 = vpack.c.bf16 %v1009, %v1009
    %v1018 = vpack.c.bf16 %v1010, %v1010
    %v1019 = vpack.c.bf16 %v1011, %v1011
    %v1020 = vpack.c.bf16 %v1012, %v1012
    %v1021 = vpack.c.bf16 %v1013, %v1013
    %v1022 = vpack.c.bf16 %v1014, %v1014
    %v1023 = vpack.c.bf16 %v544, %v543
    %v1024 = vpack.c.bf16 %v546, %v545
    %v1025 = vpack.c.bf16 %v548, %v547
    %v1026 = vpack.c.bf16 %v550, %v549
    %v1027 = vpack.c.bf16 %v552, %v551
    %v1028 = vpack.c.bf16 %v554, %v553
    %v1029 = vpack.c.bf16 %v556, %v555
    %v1030 = vpack.c.bf16 %v558, %v557
    %v1031 = vpack.c.bf16 %v560, %v559
    %v1032 = vpack.c.bf16 %v562, %v561
    %v1033 = vpack.c.bf16 %v564, %v563
    %v1034 = vpack.c.bf16 %v566, %v565
    %v1035 = vpack.c.bf16 %v568, %v567
    %v1036 = vpack.c.bf16 %v570, %v569
    %v1037 = vpack.c.bf16 %v572, %v571
    %v1038 = vpack.c.bf16 %v574, %v573
    %v1039 = vpack.c.bf16 %v576, %v575
    %v1040 = vpack.c.bf16 %v578, %v577
    %v1041 = vpack.c.bf16 %v580, %v579
    %v1042 = vpack.c.bf16 %v582, %v581
    %v1043 = vpack.c.bf16 %v584, %v583
    %v1044 = vpack.c.bf16 %v586, %v585
    %v1045 = vpack.c.bf16 %v588, %v587
    %v1046 = vpack.c.bf16 %v590, %v589
    %v1047 = vpack.c.bf16 %v592, %v591
    %v1048 = vpack.c.bf16 %v594, %v593
    %v1049 = vpack.c.bf16 %v596, %v595
    %v1050 = vpack.c.bf16 %v598, %v597
    %v1051 = vpack.c.bf16 %v600, %v599
    %v1052 = vpack.c.bf16 %v602, %v601
    %v1053 = vpack.c.bf16 %v604, %v603
    %v1054 = vpack.c.bf16 %v606, %v605
    %v1055 = vpack.c.bf16 %v608, %v607
    %v1056 = vpack.c.bf16 %v610, %v609
    %v1057 = vpack.c.bf16 %v612, %v611
    %v1058 = vpack.c.bf16 %v614, %v613
    %v1059 = vpack.c.bf16 %v616, %v615
    %v1060 = vpack.c.bf16 %v618, %v617
    %v1061 = vpack.c.bf16 %v620, %v619
    %v1062 = vpack.c.bf16 %v622, %v621
    %v1063 = vpack.c.bf16 %v624, %v623
    %v1064 = vpack.c.bf16 %v626, %v625
    %v1065 = vpack.c.bf16 %v628, %v627
    %v1066 = vpack.c.bf16 %v630, %v629
    %v1067 = vpack.c.bf16 %v632, %v631
    %v1068 = vpack.c.bf16 %v634, %v633
    %v1069 = vpack.c.bf16 %v636, %v635
    %v1070 = vpack.c.bf16 %v638, %v637
    %v1071 = vpack.c.bf16 %v640, %v639
    %v1072 = vpack.c.bf16 %v642, %v641
    %v1073 = vpack.c.bf16 %v644, %v643
    %v1074 = vpack.c.bf16 %v646, %v645
    %v1075 = vpack.c.bf16 %v648, %v647
    %v1076 = vpack.c.bf16 %v650, %v649
    %v1077 = vpack.c.bf16 %v652, %v651
    %v1078 = vpack.c.bf16 %v654, %v653
    %v1079 = vpack.c.bf16 %v656, %v655
    %v1080 = vpack.c.bf16 %v658, %v657
    %v1081 = vpack.c.bf16 %v660, %v659
    %v1082 = vpack.c.bf16 %v662, %v661
    %v1083 = vpack.c.bf16 %v664, %v663
    %v1084 = vpack.c.bf16 %v666, %v665
    %v1085 = vpack.c.bf16 %v668, %v667
    %v1086 = vpack.c.bf16 %v670, %v669
    %v1087 = vld [vmem:[%s3] sm:$0x1]
    %v1088 = vld [vmem:[%s5] sm:$0x1]
    %v1089 = vld [vmem:[%s6] sm:$0xff]
    %v1090 = vld [vmem:[%s6 + $0x8] sm:$0xff]
    %v1091 = vld [vmem:[%s6 + $0x10] sm:$0xff]
    %v1092 = vld [vmem:[%s6 + $0x18] sm:$0xff]
    %v1093 = vld [vmem:[%s6 + $0x20] sm:$0xff]
    %v1094 = vld [vmem:[%s6 + $0x28] sm:$0xff]
    %v1095 = vld [vmem:[%s6 + $0x30] sm:$0xff]
    %v1096 = vld [vmem:[%s6 + $0x38] sm:$0xff]
    %v1097 = vld [vmem:[%s6 + $0x40] sm:$0xff]
    %v1098 = vld [vmem:[%s6 + $0x48] sm:$0xff]
    %v1099 = vld [vmem:[%s6 + $0x50] sm:$0xff]
    %v1100 = vld [vmem:[%s6 + $0x58] sm:$0xff]
    %v1101 = vld [vmem:[%s6 + $0x60] sm:$0xff]
    %v1102 = vld [vmem:[%s6 + $0x68] sm:$0xff]
    %v1103 = vld [vmem:[%s6 + $0x70] sm:$0xff]
    %v1104 = vmul.f32 %v1088, 0.999
    %v1105 = vmul.f32 %v1087, 0.001
    %v1106 = vadd.f32 %v1104, %v1105
    %1107 = vst [vmem:[%s9] sm:$0x1] %v1106
    %v1109 = vlaneseq
    %v1110 = vshrl.u32 %v1109, 7
    %v1111 = vsub.s32 0, %v1110
    %v1112 = vrot.slane %v1087, %v1111
    %1114 = vmatprep.subr.bf16.mxu0 0
    %1115 = vmatpush1.bf16.msra.mxu0 %v943
    %1116 = vmatprep.subr.bf16.mxu0 0
    %1117 = vmatpush1.bf16.msra.mxu0 %v944
    %1118 = vmatprep.subr.bf16.mxu0 0
    %1119 = vmatpush1.bf16.msra.mxu0 %v945
    %1120 = vmatprep.subr.bf16.mxu0 0
    %1121 = vmatpush1.bf16.msra.mxu0 %v946
    %1122 = vmatprep.subr.bf16.mxu0 0
    %1123 = vmatpush1.bf16.msra.mxu0 %v947
    %1124 = vmatprep.subr.bf16.mxu0 0
    %1125 = vmatpush1.bf16.msra.mxu0 %v948
    %1126 = vmatprep.subr.bf16.mxu0 0
    %1127 = vmatpush1.bf16.msra.mxu0 %v949
    %1128 = vmatprep.subr.bf16.mxu0 0
    %1129 = vmatpush1.bf16.msra.mxu0 %v950
    %1130 = vmatprep.subr.bf16.mxu0 0
    %1131 = vmatpush1.bf16.msra.mxu0 %v951
    %1132 = vmatprep.subr.bf16.mxu0 0
    %1133 = vmatpush1.bf16.msra.mxu0 %v952
    %1134 = vmatprep.subr.bf16.mxu0 0
    %1135 = vmatpush1.bf16.msra.mxu0 %v953
    %1136 = vmatprep.subr.bf16.mxu0 0
    %1137 = vmatpush1.bf16.msra.mxu0 %v954
    %1138 = vmatprep.subr.bf16.mxu0 0
    %1139 = vmatpush1.bf16.msra.mxu0 %v955
    %1140 = vmatprep.subr.bf16.mxu0 0
    %1141 = vmatpush1.bf16.msra.mxu0 %v956
    %1142 = vmatprep.subr.bf16.mxu0 0
    %1143 = vmatpush1.bf16.msra.mxu0 %v957
    %1144 = vmatprep.subr.bf16.mxu0 0
    %1145 = vmatpush1.bf16.msra.mxu0 %v958
    %1146 = vmatprep.mubr.bf16.mxu0 %v808
    %1147 = vmatmul.mubr.bf16.gmra.mrb[0].mxu0 %v807
    %v1148 = vpop.f32.mrb[0].mxu0
    %v1149 = vadd.f32 %v1112, %v1148
    %v1150 = vpop.f32.mrb[0].mxu0
    %v1151 = vpop.f32.mrb[0].mxu0
    %v1152 = vpop.f32.mrb[0].mxu0
    %1153 = vdwg.mxu0
    %1154 = vmatprep.subr.bf16.mxu0 0
    %1155 = vmatpush1.bf16.msra.mxu0 %v959
    %1156 = vmatprep.subr.bf16.mxu0 0
    %1157 = vmatpush1.bf16.msra.mxu0 %v960
    %1158 = vmatprep.subr.bf16.mxu0 0
    %1159 = vmatpush1.bf16.msra.mxu0 %v961
    %1160 = vmatprep.subr.bf16.mxu0 0
    %1161 = vmatpush1.bf16.msra.mxu0 %v962
    %1162 = vmatprep.subr.bf16.mxu0 0
    %1163 = vmatpush1.bf16.msra.mxu0 %v963
    %1164 = vmatprep.subr.bf16.mxu0 0
    %1165 = vmatpush1.bf16.msra.mxu0 %v964
    %1166 = vmatprep.subr.bf16.mxu0 0
    %1167 = vmatpush1.bf16.msra.mxu0 %v965
    %1168 = vmatprep.subr.bf16.mxu0 0
    %1169 = vmatpush1.bf16.msra.mxu0 %v966
    %1170 = vmatprep.subr.bf16.mxu0 0
    %1171 = vmatpush1.bf16.msra.mxu0 %v967
    %1172 = vmatprep.subr.bf16.mxu0 0
    %1173 = vmatpush1.bf16.msra.mxu0 %v968
    %1174 = vmatprep.subr.bf16.mxu0 0
    %1175 = vmatpush1.bf16.msra.mxu0 %v969
    %1176 = vmatprep.subr.bf16.mxu0 0
    %1177 = vmatpush1.bf16.msra.mxu0 %v970
    %1178 = vmatprep.subr.bf16.mxu0 0
    %1179 = vmatpush1.bf16.msra.mxu0 %v971
    %1180 = vmatprep.subr.bf16.mxu0 0
    %1181 = vmatpush1.bf16.msra.mxu0 %v972
    %1182 = vmatprep.subr.bf16.mxu0 0
    %1183 = vmatpush1.bf16.msra.mxu0 %v973
    %1184 = vmatprep.subr.bf16.mxu0 0
    %1185 = vmatpush1.bf16.msra.mxu0 %v974
    %1186 = vmatprep.mubr.bf16.mxu0 %v810
    %1187 = vmatmul.mubr.bf16.gmra.mrb[0].mxu0 %v809
    %v1188 = vpop.f32.mrb[0].mxu0
    %v1189 = vadd.f32 %v1149, %v1188
    %v1190 = vpop.f32.mrb[0].mxu0
    %v1191 = vpop.f32.mrb[0].mxu0
    %v1192 = vpop.f32.mrb[0].mxu0
    %1193 = vdwg.mxu0
    %1194 = vmatprep.subr.bf16.mxu0 0
    %1195 = vmatpush1.bf16.msra.mxu0 %v975
    %1196 = vmatprep.subr.bf16.mxu0 0
    %1197 = vmatpush1.bf16.msra.mxu0 %v976
    %1198 = vmatprep.subr.bf16.mxu0 0
    %1199 = vmatpush1.bf16.msra.mxu0 %v977
    %1200 = vmatprep.subr.bf16.mxu0 0
    %1201 = vmatpush1.bf16.msra.mxu0 %v978
    %1202 = vmatprep.subr.bf16.mxu0 0
    %1203 = vmatpush1.bf16.msra.mxu0 %v979
    %1204 = vmatprep.subr.bf16.mxu0 0
    %1205 = vmatpush1.bf16.msra.mxu0 %v980
    %1206 = vmatprep.subr.bf16.mxu0 0
    %1207 = vmatpush1.bf16.msra.mxu0 %v981
    %1208 = vmatprep.subr.bf16.mxu0 0
    %1209 = vmatpush1.bf16.msra.mxu0 %v982
    %1210 = vmatprep.subr.bf16.mxu0 0
    %1211 = vmatpush1.bf16.msra.mxu0 %v983
    %1212 = vmatprep.subr.bf16.mxu0 0
    %1213 = vmatpush1.bf16.msra.mxu0 %v984
    %1214 = vmatprep.subr.bf16.mxu0 0
    %1215 = vmatpush1.bf16.msra.mxu0 %v985
    %1216 = vmatprep.subr.bf16.mxu0 0
    %1217 = vmatpush1.bf16.msra.mxu0 %v986
    %1218 = vmatprep.subr.bf16.mxu0 0
    %1219 = vmatpush1.bf16.msra.mxu0 %v987
    %1220 = vmatprep.subr.bf16.mxu0 0
    %1221 = vmatpush1.bf16.msra.mxu0 %v988
    %1222 = vmatprep.subr.bf16.mxu0 0
    %1223 = vmatpush1.bf16.msra.mxu0 %v989
    %1224 = vmatprep.subr.bf16.mxu0 0
    %1225 = vmatpush1.bf16.msra.mxu0 %v990
    %1226 = vmatprep.mubr.bf16.mxu0 %v812
    %1227 = vmatmul.mubr.bf16.gmra.mrb[0].mxu0 %v811
    %v1228 = vpop.f32.mrb[0].mxu0
    %v1229 = vadd.f32 %v1189, %v1228
    %v1230 = vpop.f32.mrb[0].mxu0
    %v1231 = vpop.f32.mrb[0].mxu0
    %v1232 = vpop.f32.mrb[0].mxu0
    %1233 = vdwg.mxu0
    %1234 = vmatprep.subr.bf16.mxu0 0
    %1235 = vmatpush1.bf16.msra.mxu0 %v991
    %1236 = vmatprep.subr.bf16.mxu0 0
    %1237 = vmatpush1.bf16.msra.mxu0 %v992
    %1238 = vmatprep.subr.bf16.mxu0 0
    %1239 = vmatpush1.bf16.msra.mxu0 %v993
    %1240 = vmatprep.subr.bf16.mxu0 0
    %1241 = vmatpush1.bf16.msra.mxu0 %v994
    %1242 = vmatprep.subr.bf16.mxu0 0
    %1243 = vmatpush1.bf16.msra.mxu0 %v995
    %1244 = vmatprep.subr.bf16.mxu0 0
    %1245 = vmatpush1.bf16.msra.mxu0 %v996
    %1246 = vmatprep.subr.bf16.mxu0 0
    %1247 = vmatpush1.bf16.msra.mxu0 %v997
    %1248 = vmatprep.subr.bf16.mxu0 0
    %1249 = vmatpush1.bf16.msra.mxu0 %v998
    %1250 = vmatprep.subr.bf16.mxu0 0
    %1251 = vmatpush1.bf16.msra.mxu0 %v999
    %1252 = vmatprep.subr.bf16.mxu0 0
    %1253 = vmatpush1.bf16.msra.mxu0 %v1000
    %1254 = vmatprep.subr.bf16.mxu0 0
    %1255 = vmatpush1.bf16.msra.mxu0 %v1001
    %1256 = vmatprep.subr.bf16.mxu0 0
    %1257 = vmatpush1.bf16.msra.mxu0 %v1002
    %1258 = vmatprep.subr.bf16.mxu0 0
    %1259 = vmatpush1.bf16.msra.mxu0 %v1003
    %1260 = vmatprep.subr.bf16.mxu0 0
    %1261 = vmatpush1.bf16.msra.mxu0 %v1004
    %1262 = vmatprep.subr.bf16.mxu0 0
    %1263 = vmatpush1.bf16.msra.mxu0 %v1005
    %1264 = vmatprep.subr.bf16.mxu0 0
    %1265 = vmatpush1.bf16.msra.mxu0 %v1006
    %1266 = vmatprep.mubr.bf16.mxu0 %v814
    %1267 = vmatmul.mubr.bf16.gmra.mrb[0].mxu0 %v813
    %v1268 = vpop.f32.mrb[0].mxu0
    %v1269 = vadd.f32 %v1229, %v1268
    %v1270 = vpop.f32.mrb[0].mxu0
    %v1271 = vpop.f32.mrb[0].mxu0
    %v1272 = vpop.f32.mrb[0].mxu0
    %1273 = vdwg.mxu0
    %v1274 = vmul.f32 %v1269, %v1269
    %1275 = vadd.xlane.f32.xlu0 %v1274
    %v1276 = vpop.xlane.xlu0 %1275
    %v1277 = vmax.f32 %v1276, 1e-24
    %v1278 = vrsqrt.pop %v1277
    %v1279 = vmul.f32 %v1269, %v1278
    %v1281 = vlaneseq
    %v1282 = vshrl.u32 %v1281, 7
    %v1283 = vsub.s32 0, %v1282
    %v1284 = vrot.slane %v1106, %v1283
    %1286 = vmatprep.subr.bf16.mxu0 0
    %1287 = vmatpush1.bf16.msra.mxu0 %v1023
    %1288 = vmatprep.subr.bf16.mxu0 0
    %1289 = vmatpush1.bf16.msra.mxu0 %v1024
    %1290 = vmatprep.subr.bf16.mxu0 0
    %1291 = vmatpush1.bf16.msra.mxu0 %v1025
    %1292 = vmatprep.subr.bf16.mxu0 0
    %1293 = vmatpush1.bf16.msra.mxu0 %v1026
    %1294 = vmatprep.subr.bf16.mxu0 0
    %1295 = vmatpush1.bf16.msra.mxu0 %v1027
    %1296 = vmatprep.subr.bf16.mxu0 0
    %1297 = vmatpush1.bf16.msra.mxu0 %v1028
    %1298 = vmatprep.subr.bf16.mxu0 0
    %1299 = vmatpush1.bf16.msra.mxu0 %v1029
    %1300 = vmatprep.subr.bf16.mxu0 0
    %1301 = vmatpush1.bf16.msra.mxu0 %v1030
    %1302 = vmatprep.subr.bf16.mxu0 0
    %1303 = vmatpush1.bf16.msra.mxu0 %v1031
    %1304 = vmatprep.subr.bf16.mxu0 0
    %1305 = vmatpush1.bf16.msra.mxu0 %v1032
    %1306 = vmatprep.subr.bf16.mxu0 0
    %1307 = vmatpush1.bf16.msra.mxu0 %v1033
    %1308 = vmatprep.subr.bf16.mxu0 0
    %1309 = vmatpush1.bf16.msra.mxu0 %v1034
    %1310 = vmatprep.subr.bf16.mxu0 0
    %1311 = vmatpush1.bf16.msra.mxu0 %v1035
    %1312 = vmatprep.subr.bf16.mxu0 0
    %1313 = vmatpush1.bf16.msra.mxu0 %v1036
    %1314 = vmatprep.subr.bf16.mxu0 0
    %1315 = vmatpush1.bf16.msra.mxu0 %v1037
    %1316 = vmatprep.subr.bf16.mxu0 0
    %1317 = vmatpush1.bf16.msra.mxu0 %v1038
    %1318 = vmatprep.mubr.bf16.mxu0 %v1016
    %1319 = vmatmul.mubr.bf16.gmra.mrb[0].mxu0 %v1015
    %v1320 = vpop.f32.mrb[0].mxu0
    %v1321 = vadd.f32 %v1284, %v1320
    %v1322 = vpop.f32.mrb[0].mxu0
    %v1323 = vpop.f32.mrb[0].mxu0
    %v1324 = vpop.f32.mrb[0].mxu0
    %1325 = vdwg.mxu0
    %1326 = vmatprep.subr.bf16.mxu0 0
    %1327 = vmatpush1.bf16.msra.mxu0 %v1039
    %1328 = vmatprep.subr.bf16.mxu0 0
    %1329 = vmatpush1.bf16.msra.mxu0 %v1040
    %1330 = vmatprep.subr.bf16.mxu0 0
    %1331 = vmatpush1.bf16.msra.mxu0 %v1041
    %1332 = vmatprep.subr.bf16.mxu0 0
    %1333 = vmatpush1.bf16.msra.mxu0 %v1042
    %1334 = vmatprep.subr.bf16.mxu0 0
    %1335 = vmatpush1.bf16.msra.mxu0 %v1043
    %1336 = vmatprep.subr.bf16.mxu0 0
    %1337 = vmatpush1.bf16.msra.mxu0 %v1044
    %1338 = vmatprep.subr.bf16.mxu0 0
    %1339 = vmatpush1.bf16.msra.mxu0 %v1045
    %1340 = vmatprep.subr.bf16.mxu0 0
    %1341 = vmatpush1.bf16.msra.mxu0 %v1046
    %1342 = vmatprep.subr.bf16.mxu0 0
    %1343 = vmatpush1.bf16.msra.mxu0 %v1047
    %1344 = vmatprep.subr.bf16.mxu0 0
    %1345 = vmatpush1.bf16.msra.mxu0 %v1048
    %1346 = vmatprep.subr.bf16.mxu0 0
    %1347 = vmatpush1.bf16.msra.mxu0 %v1049
    %1348 = vmatprep.subr.bf16.mxu0 0
    %1349 = vmatpush1.bf16.msra.mxu0 %v1050
    %1350 = vmatprep.subr.bf16.mxu0 0
    %1351 = vmatpush1.bf16.msra.mxu0 %v1051
    %1352 = vmatprep.subr.bf16.mxu0 0
    %1353 = vmatpush1.bf16.msra.mxu0 %v1052
    %1354 = vmatprep.subr.bf16.mxu0 0
    %1355 = vmatpush1.bf16.msra.mxu0 %v1053
    %1356 = vmatprep.subr.bf16.mxu0 0
    %1357 = vmatpush1.bf16.msra.mxu0 %v1054
    %1358 = vmatprep.mubr.bf16.mxu0 %v1018
    %1359 = vmatmul.mubr.bf16.gmra.mrb[0].mxu0 %v1017
    %v1360 = vpop.f32.mrb[0].mxu0
    %v1361 = vadd.f32 %v1321, %v1360
    %v1362 = vpop.f32.mrb[0].mxu0
    %v1363 = vpop.f32.mrb[0].mxu0
    %v1364 = vpop.f32.mrb[0].mxu0
    %1365 = vdwg.mxu0
    %1366 = vmatprep.subr.bf16.mxu0 0
    %1367 = vmatpush1.bf16.msra.mxu0 %v1055
    %1368 = vmatprep.subr.bf16.mxu0 0
    %1369 = vmatpush1.bf16.msra.mxu0 %v1056
    %1370 = vmatprep.subr.bf16.mxu0 0
    %1371 = vmatpush1.bf16.msra.mxu0 %v1057
    %1372 = vmatprep.subr.bf16.mxu0 0
    %1373 = vmatpush1.bf16.msra.mxu0 %v1058
    %1374 = vmatprep.subr.bf16.mxu0 0
    %1375 = vmatpush1.bf16.msra.mxu0 %v1059
    %1376 = vmatprep.subr.bf16.mxu0 0
    %1377 = vmatpush1.bf16.msra.mxu0 %v1060
    %1378 = vmatprep.subr.bf16.mxu0 0
    %1379 = vmatpush1.bf16.msra.mxu0 %v1061
    %1380 = vmatprep.subr.bf16.mxu0 0
    %1381 = vmatpush1.bf16.msra.mxu0 %v1062
    %1382 = vmatprep.subr.bf16.mxu0 0
    %1383 = vmatpush1.bf16.msra.mxu0 %v1063
    %1384 = vmatprep.subr.bf16.mxu0 0
    %1385 = vmatpush1.bf16.msra.mxu0 %v1064
    %1386 = vmatprep.subr.bf16.mxu0 0
    %1387 = vmatpush1.bf16.msra.mxu0 %v1065
    %1388 = vmatprep.subr.bf16.mxu0 0
    %1389 = vmatpush1.bf16.msra.mxu0 %v1066
    %1390 = vmatprep.subr.bf16.mxu0 0
    %1391 = vmatpush1.bf16.msra.mxu0 %v1067
    %1392 = vmatprep.subr.bf16.mxu0 0
    %1393 = vmatpush1.bf16.msra.mxu0 %v1068
    %1394 = vmatprep.subr.bf16.mxu0 0
    %1395 = vmatpush1.bf16.msra.mxu0 %v1069
    %1396 = vmatprep.subr.bf16.mxu0 0
    %1397 = vmatpush1.bf16.msra.mxu0 %v1070
    %1398 = vmatprep.mubr.bf16.mxu0 %v1020
    %1399 = vmatmul.mubr.bf16.gmra.mrb[0].mxu0 %v1019
    %v1400 = vpop.f32.mrb[0].mxu0
    %v1401 = vadd.f32 %v1361, %v1400
    %v1402 = vpop.f32.mrb[0].mxu0
    %v1403 = vpop.f32.mrb[0].mxu0
    %v1404 = vpop.f32.mrb[0].mxu0
    %1405 = vdwg.mxu0
    %1406 = vmatprep.subr.bf16.mxu0 0
    %1407 = vmatpush1.bf16.msra.mxu0 %v1071
    %1408 = vmatprep.subr.bf16.mxu0 0
    %1409 = vmatpush1.bf16.msra.mxu0 %v1072
    %1410 = vmatprep.subr.bf16.mxu0 0
    %1411 = vmatpush1.bf16.msra.mxu0 %v1073
    %1412 = vmatprep.subr.bf16.mxu0 0
    %1413 = vmatpush1.bf16.msra.mxu0 %v1074
    %1414 = vmatprep.subr.bf16.mxu0 0
    %1415 = vmatpush1.bf16.msra.mxu0 %v1075
    %1416 = vmatprep.subr.bf16.mxu0 0
    %1417 = vmatpush1.bf16.msra.mxu0 %v1076
    %1418 = vmatprep.subr.bf16.mxu0 0
    %1419 = vmatpush1.bf16.msra.mxu0 %v1077
    %1420 = vmatprep.subr.bf16.mxu0 0
    %1421 = vmatpush1.bf16.msra.mxu0 %v1078
    %1422 = vmatprep.subr.bf16.mxu0 0
    %1423 = vmatpush1.bf16.msra.mxu0 %v1079
    %1424 = vmatprep.subr.bf16.mxu0 0
    %1425 = vmatpush1.bf16.msra.mxu0 %v1080
    %1426 = vmatprep.subr.bf16.mxu0 0
    %1427 = vmatpush1.bf16.msra.mxu0 %v1081
    %1428 = vmatprep.subr.bf16.mxu0 0
    %1429 = vmatpush1.bf16.msra.mxu0 %v1082
    %1430 = vmatprep.subr.bf16.mxu0 0
    %1431 = vmatpush1.bf16.msra.mxu0 %v1083
    %1432 = vmatprep.subr.bf16.mxu0 0
    %1433 = vmatpush1.bf16.msra.mxu0 %v1084
    %1434 = vmatprep.subr.bf16.mxu0 0
    %1435 = vmatpush1.bf16.msra.mxu0 %v1085
    %1436 = vmatprep.subr.bf16.mxu0 0
    %1437 = vmatpush1.bf16.msra.mxu0 %v1086
    %1438 = vmatprep.mubr.bf16.mxu0 %v1022
    %1439 = vmatmul.mubr.bf16.gmra.mrb[0].mxu0 %v1021
    %v1440 = vpop.f32.mrb[0].mxu0
    %v1441 = vadd.f32 %v1401, %v1440
    %v1442 = vpop.f32.mrb[0].mxu0
    %v1443 = vpop.f32.mrb[0].mxu0
    %v1444 = vpop.f32.mrb[0].mxu0
    %1445 = vdwg.mxu0
    %v1446 = vmul.f32 %v1441, %v1441
    %1447 = vadd.xlane.f32.xlu0 %v1446
    %v1448 = vpop.xlane.xlu0 %1447
    %v1449 = vmax.f32 %v1448, 1e-24
    %v1450 = vrsqrt.pop %v1449
    %v1451 = vmul.f32 %v1441, %v1450
    %1452 = vmatprep.subr.mxu0 0.0
    %1453 = vmatpush1.xpose.msra.mxu0 %v1451
    %1454 = vmatprep.subr.mxu0 0.0
    %1455 = vmatpush1.xpose.msra.mxu0 0.0
    %1456 = vmatprep.subr.mxu0 0.0
    %1457 = vmatpush1.xpose.msra.mxu0 0.0
    %1458 = vmatprep.subr.mxu0 0.0
    %1459 = vmatpush1.xpose.msra.mxu0 0.0
    %1460 = vmatprep.subr.mxu0 0.0
    %1461 = vmatpush1.xpose.msra.mxu0 0.0
    %1462 = vmatprep.subr.mxu0 0.0
    %1463 = vmatpush1.xpose.msra.mxu0 0.0
    %1464 = vmatprep.subr.mxu0 0.0
    %1465 = vmatpush1.xpose.msra.mxu0 0.0
    %1466 = vmatprep.subr.mxu0 0.0
    %1467 = vmatpush1.xpose.msra.mxu0 0.0
    %1468 = vmatprep.subr.mxu0 0.0
    %1469 = vmatpush1.xpose.msra.mxu0 0.0
    %1470 = vmatprep.subr.mxu0 0.0
    %1471 = vmatpush1.xpose.msra.mxu0 0.0
    %1472 = vmatprep.subr.mxu0 0.0
    %1473 = vmatpush1.xpose.msra.mxu0 0.0
    %1474 = vmatprep.subr.mxu0 0.0
    %1475 = vmatpush1.xpose.msra.mxu0 0.0
    %1476 = vmatprep.subr.mxu0 0.0
    %1477 = vmatpush1.xpose.msra.mxu0 0.0
    %1478 = vmatprep.subr.mxu0 0.0
    %1479 = vmatpush1.xpose.msra.mxu0 0.0
    %1480 = vmatprep.subr.mxu0 0.0
    %1481 = vmatpush1.xpose.msra.mxu0 0.0
    %1482 = vmatprep.subr.mxu0 0.0
    %1483 = vmatpush1.xpose.msra.mxu0 0.0
    %1484 = vmatprep.subr.mxu0 0.0
    %1485 = vmatpush1.xpose.msra.mxu0 0.0
    %1486 = vmatprep.subr.mxu0 0.0
    %1487 = vmatpush1.xpose.msra.mxu0 0.0
    %1488 = vmatprep.subr.mxu0 0.0
    %1489 = vmatpush1.xpose.msra.mxu0 0.0
    %1490 = vmatprep.subr.mxu0 0.0
    %1491 = vmatpush1.xpose.msra.mxu0 0.0
    %1492 = vmatprep.subr.mxu0 0.0
    %1493 = vmatpush1.xpose.msra.mxu0 0.0
    %1494 = vmatprep.subr.mxu0 0.0
    %1495 = vmatpush1.xpose.msra.mxu0 0.0
    %1496 = vmatprep.subr.mxu0 0.0
    %1497 = vmatpush1.xpose.msra.mxu0 0.0
    %1498 = vmatprep.subr.mxu0 0.0
    %1499 = vmatpush1.xpose.msra.mxu0 0.0
    %1500 = vmatprep.subr.mxu0 0.0
    %1501 = vmatpush1.xpose.msra.mxu0 0.0
    %1502 = vmatprep.subr.mxu0 0.0
    %1503 = vmatpush1.xpose.msra.mxu0 0.0
    %1504 = vmatprep.subr.mxu0 0.0
    %1505 = vmatpush1.xpose.msra.mxu0 0.0
    %1506 = vmatprep.subr.mxu0 0.0
    %1507 = vmatpush1.xpose.msra.mxu0 0.0
    %1508 = vmatprep.subr.mxu0 0.0
    %1509 = vmatpush1.xpose.msra.mxu0 0.0
    %1510 = vmatprep.subr.mxu0 0.0
    %1511 = vmatpush1.xpose.msra.mxu0 0.0
    %1512 = vmatprep.subr.mxu0 0.0
    %1513 = vmatpush1.xpose.msra.mxu0 0.0
    %1514 = vmatprep.subr.mxu0 0.0
    %1515 = vmatpush1.xpose.msra.mxu0 0.0
    %1516 = vmatprep.mubr.f32.mxu0 0.0
    %1517 = vmatmul.mubr.f32.gmra.mrb[0].mxu0 %v1279
    %v1518 = vpop.f32.mrb[0].mxu0
    %v1519 = vadd.f32 0.0, %v1518
    %v1520 = vpop.f32.mrb[0].mxu0
    %1521 = vdwg.mxu0
    %v1522 = vmul.f32 %v1519, 100.0
    %1523 = vmatprep.subr.mxu0 0.0
    %1524 = vmatpush1.xpose.msra.mxu0 %v1089
    %1525 = vmatprep.subr.mxu0 0.0
    %1526 = vmatpush1.xpose.msra.mxu0 %v1090
    %1527 = vmatprep.subr.mxu0 0.0
    %1528 = vmatpush1.xpose.msra.mxu0 %v1091
    %1529 = vmatprep.subr.mxu0 0.0
    %1530 = vmatpush1.xpose.msra.mxu0 %v1092
    %1531 = vmatprep.subr.mxu0 0.0
    %1532 = vmatpush1.xpose.msra.mxu0 %v1093
    %1533 = vmatprep.subr.mxu0 0.0
    %1534 = vmatpush1.xpose.msra.mxu0 %v1094
    %1535 = vmatprep.subr.mxu0 0.0
    %1536 = vmatpush1.xpose.msra.mxu0 %v1095
    %1537 = vmatprep.subr.mxu0 0.0
    %1538 = vmatpush1.xpose.msra.mxu0 %v1096
    %1539 = vmatprep.subr.mxu0 0.0
    %1540 = vmatpush1.xpose.msra.mxu0 %v1097
    %1541 = vmatprep.subr.mxu0 0.0
    %1542 = vmatpush1.xpose.msra.mxu0 %v1098
    %1543 = vmatprep.subr.mxu0 0.0
    %1544 = vmatpush1.xpose.msra.mxu0 %v1099
    %1545 = vmatprep.subr.mxu0 0.0
    %1546 = vmatpush1.xpose.msra.mxu0 %v1100
    %1547 = vmatprep.subr.mxu0 0.0
    %1548 = vmatpush1.xpose.msra.mxu0 %v1101
    %1549 = vmatprep.subr.mxu0 0.0
    %1550 = vmatpush1.xpose.msra.mxu0 %v1102
    %1551 = vmatprep.subr.mxu0 0.0
    %1552 = vmatpush1.xpose.msra.mxu0 %v1103
    %1553 = vmatprep.subr.mxu0 0.0
    %1554 = vmatpush1.xpose.msra.mxu0 0.0
    %1555 = vmatprep.subr.mxu0 0.0
    %1556 = vmatpush1.xpose.msra.mxu0 0.0
    %1557 = vmatprep.subr.mxu0 0.0
    %1558 = vmatpush1.xpose.msra.mxu0 0.0
    %1559 = vmatprep.subr.mxu0 0.0
    %1560 = vmatpush1.xpose.msra.mxu0 0.0
    %1561 = vmatprep.subr.mxu0 0.0
    %1562 = vmatpush1.xpose.msra.mxu0 0.0
    %1563 = vmatprep.subr.mxu0 0.0
    %1564 = vmatpush1.xpose.msra.mxu0 0.0
    %1565 = vmatprep.subr.mxu0 0.0
    %1566 = vmatpush1.xpose.msra.mxu0 0.0
    %1567 = vmatprep.subr.mxu0 0.0
    %1568 = vmatpush1.xpose.msra.mxu0 0.0
    %1569 = vmatprep.subr.mxu0 0.0
    %1570 = vmatpush1.xpose.msra.mxu0 0.0
    %1571 = vmatprep.subr.mxu0 0.0
    %1572 = vmatpush1.xpose.msra.mxu0 0.0
    %1573 = vmatprep.subr.mxu0 0.0
    %1574 = vmatpush1.xpose.msra.mxu0 0.0
    %1575 = vmatprep.subr.mxu0 0.0
    %1576 = vmatpush1.xpose.msra.mxu0 0.0
    %1577 = vmatprep.subr.mxu0 0.0
    %1578 = vmatpush1.xpose.msra.mxu0 0.0
    %1579 = vmatprep.subr.mxu0 0.0
    %1580 = vmatpush1.xpose.msra.mxu0 0.0
    %1581 = vmatprep.subr.mxu0 0.0
    %1582 = vmatpush1.xpose.msra.mxu0 0.0
    %1583 = vmatprep.subr.mxu0 0.0
    %1584 = vmatpush1.xpose.msra.mxu0 0.0
    %1585 = vmatprep.subr.mxu0 0.0
    %1586 = vmatpush1.xpose.msra.mxu0 0.0
    %1587 = vmatprep.mubr.f32.mxu0 0.0
    %1588 = vmatmul.mubr.f32.gmra.mrb[0].mxu0 %v1279
    %v1589 = vpop.f32.mrb[0].mxu0
    %v1590 = vadd.f32 0.0, %v1589
    %v1591 = vpop.f32.mrb[0].mxu0
    %1592 = vdwg.mxu0
    %v1593 = vmul.f32 %v1590, 100.0
    %vm1594 = vcmask 64512
    %v1595 = vsel %vm1594, %v1522, -inf
    %1596 = vmax.xlane.f32.xlu0 %v1595
    %v1597 = vpop.xlane.xlu0 %1596
    %vm1598 = vcmask 982016
    %v1599 = vsel %vm1598, %v1593, -inf
    %1600 = vmax.xlane.f32.xlu0 %v1599
    %v1601 = vpop.xlane.xlu0 %1600
    %v1602 = vmax.f32 %v1597, %v1601
    %v1603 = vsub.f32 %v1522, %v1602
    %v1604 = vmul.f32 %v1603, 1.442695
    %v1605 = vpow.pop %v1604
    %v1606 = vsel %vm1594, %v1605, 0.0
    %1607 = vadd.xlane.f32.xlu0 %v1606
    %v1608 = vpop.xlane.xlu0 %1607
    %v1609 = vsub.f32 %v1593, %v1602
    %v1610 = vmul.f32 %v1609, 1.442695
    %v1611 = vpow.pop %v1610
    %v1612 = vsel %vm1598, %v1611, 0.0
    %1613 = vadd.xlane.f32.xlu0 %v1612
    %v1614 = vpop.xlane.xlu0 %1613
    %v1615 = vadd.f32 %v1608, %v1614
    %v1616 = vlog2.pop %v1615
    %v1617 = vmul.f32 %v1616, 0.6931472
    %v1618 = vadd.f32 %v1617, %v1602
    %v1619 = vmul.f32 %v1279, %v1451
    %1620 = vadd.xlane.f32.xlu0 %v1619
    %v1621 = vpop.xlane.xlu0 %1620
    %v1622 = vmul.f32 %v1621, 100.0
    %v1623 = vsub.f32 %v1618, %v1622
    %vm1624 = vcmask 7168
    %v1625 = vsel %vm1624, %v1623, 0.0
    %1626 = vadd.xlane.f32.xlu0 %v1625
    %v1627 = vpop.xlane.xlu0 %1626
    %v1628 = vrot.slane %v1627, 4
    %v1629 = vadd.f32 %v1627, %v1628
    %v1630 = vrot.slane %v1629, 2
    %v1631 = vadd.f32 %v1629, %v1630
    %v1632 = vrot.slane %v1631, 1
    %v1633 = vadd.f32 %v1631, %v1632
    %s1634 = vtos %v1633
    %v1635 = vrcp.pop 8.0
    %s1636 = vtos %v1635
    %s1637 = smul.f32 %s1634, %s1636
    %s1638 = scalar_lea.smem [#allocation2], 0
    %1639 = sst [smem:[%s1638]] %s1637
    // Predicated region
    $region30: #{moco_forward.1} parent=1 // pred_check
      _
    $region31: #{moco_forward.1} parent=1 // pred_check_branch
      %1641 = sbr.rel (0) target = $region33
    $region32: #{moco_forward.1} parent=1 // pred_region
      %s1643 = ssub.s32 16, 16
      %1644 = vsyncadd [#allocation3], %s1643
      %1647 = dma.smem_to_hbm [#allocation2], 16, %s7, [#allocation3]
    $region33: #{moco_forward.1} parent=1 // pred_fallthru
      _
    // Predicated region
    $region34: #{moco_forward.1} parent=1 // pred_check
      _
    $region35: #{moco_forward.1} parent=1 // pred_check_branch
      %1649 = sbr.rel (0) target = $region37
    $region36: #{moco_forward.1} parent=1 // pred_region
      _
    $region37: #{moco_forward.1} parent=1 // pred_fallthru
      _
    // Predicated region
    $region38: #{moco_forward.1} parent=1 // pred_check
      _
    $region39: #{moco_forward.1} parent=1 // pred_check_branch
      %1651 = sbr.rel (0) target = $region41
    $region40: #{moco_forward.1} parent=1 // pred_region
      _
    $region41: #{moco_forward.1} parent=1 // pred_fallthru
      _
    // Predicated region
    $region42: #{moco_forward.1} parent=1 // pred_check
      _
    $region43: #{moco_forward.1} parent=1 // pred_check_branch
      %1653 = sbr.rel (0) target = $region45
    $region44: #{moco_forward.1} parent=1 // pred_region
      %1654 = dma.done [#allocation3], 16
    $region45: #{moco_forward.1} parent=1 // pred_fallthru
      _
    // Predicated region
    $region46: #{moco_forward.1} parent=1 // pred_check
      _
    $region47: #{moco_forward.1} parent=1 // pred_check_branch
      %1656 = sbr.rel (0) target = $region49
    $region48: #{moco_forward.1} parent=1 // pred_region
      _
    $region49: #{moco_forward.1} parent=1 // pred_fallthru
      _
    // Predicated region
    $region50: #{moco_forward.1} parent=1 // pred_check
      _
    $region51: #{moco_forward.1} parent=1 // pred_check_branch
      %1658 = sbr.rel (0) target = $region53
    $region52: #{moco_forward.1} parent=1 // pred_region
      _
    $region53: #{moco_forward.1} parent=1 // pred_fallthru
      _
    %1659 = sfence
    %1660 = vsyncpa [#allocation3], 1

</llo_original>
